<compile_context>
chip_gen: v7x
topology: tpu7x:2x2x1
jax: 0.10.0
libtpu: 0.0.40
codegen_flags: <defaults>
</compile_context>

<pallas_src>
import functools

import jax
import jax.numpy as jnp
from jax import lax
from jax.experimental import pallas as pl
from jax.experimental.pallas import tpu as pltpu


def _conv1x1_bn_kernel(x_ref, w_ref, gb_ref, o_ref):
    # x_ref:  [Cin, M]   resident across grid steps (constant block index)
    # w_ref:  [TC, Cin]  per-step tile of the (padded) weight matrix
    # gb_ref: [TC, 2]    column 0 = gamma, column 1 = beta   (f32)
    # o_ref:  [TC, M]
    # 1x1 conv == matmul on the MXU (channels-out on sublanes, spatial on lanes
    # -> BN reductions go over the lane axis).
    y = jnp.dot(w_ref[...], x_ref[...], preferred_element_type=jnp.float32)  # [TC, M]

    m = y.shape[-1]
    inv_m = 1.0 / m
    # Single-pass batch statistics (biased variance, training-mode BN).
    mean = jnp.sum(y, axis=-1, keepdims=True) * inv_m                 # [TC, 1]
    mean_sq = jnp.sum(y * y, axis=-1, keepdims=True) * inv_m          # [TC, 1]
    var = mean_sq - mean * mean
    inv = lax.rsqrt(var + 1e-3)                                       # eps = 0.001

    gamma = gb_ref[:, 0:1]
    beta = gb_ref[:, 1:2]
    # Fold BN affine into one FMA over the full [TC, M] tile.
    scale = gamma * inv
    shift = beta - mean * scale
    o_ref[...] = (y * scale + shift).astype(o_ref.dtype)


@functools.partial(jax.jit, static_argnames=("matmul_dtype",))
def conv1x1_bn(x_nchw, weight_oihw, gamma, beta, *, matmul_dtype=jnp.float32):
    """x_nchw: [N, Cin, H, W]; weight_oihw: [Cout, Cin, 1, 1]; gamma/beta: [Cout]."""
    N, Cin, H, W = x_nchw.shape
    Cout = weight_oihw.shape[0]
    M = N * H * W

    # [N, Cin, H, W] -> [Cin, M]; free reshape when N == 1 (the module's case).
    if N == 1:
        x_cm = x_nchw.reshape(Cin, M)
    else:
        x_cm = jnp.transpose(x_nchw, (1, 0, 2, 3)).reshape(Cin, M)
    w = weight_oihw.reshape(Cout, Cin)                  # [Cout, Cin]

    # Optional bf16 MXU operands (v5e win); BN math / accumulation stay f32.
    x_cm = x_cm.astype(matmul_dtype)
    w = w.astype(matmul_dtype)

    # Pack gamma/beta into one (Cout, 2) transfer.
    gb = jnp.stack([gamma, beta], axis=1).astype(jnp.float32)

    # Pad Cout 200 -> 256 so a 2-step grid splits it into two aligned tiles
    # (megacore on v7x; weight-DMA/compute overlap on single-TC chips).
    TC = 128
    n_tiles = max(1, -(-Cout // TC))          # cdiv
    Cout_pad = n_tiles * TC
    pad = Cout_pad - Cout
    if pad:
        w = jnp.pad(w, ((0, pad), (0, 0)))
        gb = jnp.pad(gb, ((0, pad), (0, 0)))

    bytes_accessed = (
        x_cm.size * x_cm.dtype.itemsize
        + w.size * w.dtype.itemsize
        + gb.size * gb.dtype.itemsize
        + Cout_pad * M * 4
    )
    cost = pl.CostEstimate(
        flops=2 * Cout_pad * Cin * M,
        transcendentals=Cout_pad,
        bytes_accessed=bytes_accessed,
    )

    out_cm = pl.pallas_call(
        _conv1x1_bn_kernel,
        out_shape=jax.ShapeDtypeStruct((Cout_pad, M), jnp.float32),
        grid=(n_tiles,),
        in_specs=[
            pl.BlockSpec((Cin, M), lambda i: (0, 0)),     # x resident (constant block)
            pl.BlockSpec((TC, Cin), lambda i: (i, 0)),    # weight tile per step
            pl.BlockSpec((TC, 2), lambda i: (i, 0)),      # gamma/beta tile
        ],
        out_specs=pl.BlockSpec((TC, M), lambda i: (i, 0)),
        compiler_params=pltpu.CompilerParams(
            dimension_semantics=("parallel",),
        ),
        cost_estimate=cost,
    )(x_cm, w, gb)

    out_cm = out_cm[:Cout]                                # drop Cout padding
    # [Cout, M] -> NCHW; free reshape when N == 1.
    if N == 1:
        return out_cm.reshape(1, Cout, H, W)
    return jnp.transpose(out_cm.reshape(Cout, N, H, W), (1, 0, 2, 3))


def reference(x_nchw, weight_oihw, gamma, beta):
    N, Cin, H, W = x_nchw.shape
    Cout = weight_oihw.shape[0]
    w = weight_oihw.reshape(Cout, Cin)
    y = jnp.einsum("nchw,oc->nohw", x_nchw, w)
    mean = jnp.mean(y, axis=(0, 2, 3), keepdims=True)
    var = jnp.mean((y - mean) ** 2, axis=(0, 2, 3), keepdims=True)
    g = gamma.reshape(1, Cout, 1, 1)
    b = beta.reshape(1, Cout, 1, 1)
    return (y - mean) * lax.rsqrt(var + 1e-3) * g + b


if __name__ == "__main__":
    # Shapes implied by the module: Conv2d(1200 -> 200, 1x1); input 1x1200x14x14.
    N, Cin, H, W = 1, 1200, 14, 14
    Cout = 200

    key = jax.random.PRNGKey(0)
    kx, kw = jax.random.split(key)
    x = jax.random.normal(kx, (N, Cin, H, W), dtype=jnp.float32)
    # Deterministic weight init (conv has bias=False).
    conv_w = jax.random.normal(kw, (Cout, Cin, 1, 1), dtype=jnp.float32) * 0.02
    # PyTorch BatchNorm2d default affine init: weight=1, bias=0.
    gamma = jnp.ones((Cout,), dtype=jnp.float32)
    beta = jnp.zeros((Cout,), dtype=jnp.float32)

    ref = reference(x, conv_w, gamma, beta)

    # f32 MXU path: strict parity with the fp32 PyTorch module.
    out_f32 = jax.block_until_ready(
        conv1x1_bn(x, conv_w, gamma, beta, matmul_dtype=jnp.float32)
    )
    assert out_f32.shape == (N, Cout, H, W), out_f32.shape
    assert jnp.allclose(out_f32, ref, atol=1e-3, rtol=1e-3), float(
        jnp.max(jnp.abs(out_f32 - ref))
    )

    # bf16 MXU operand path (perf option, mainly v5e): K=1200 contraction with
    # bf16 inputs needs a looser tolerance.
    out_bf16 = jax.block_until_ready(
        conv1x1_bn(x, conv_w, gamma, beta, matmul_dtype=jnp.bfloat16)
    )
    assert out_bf16.shape == (N, Cout, H, W), out_bf16.shape
    assert jnp.allclose(out_bf16, ref, atol=3e-2, rtol=3e-2), float(
        jnp.max(jnp.abs(out_bf16 - ref))
    )

    print("KERNEL_OK")
</pallas_src>

<mosaic_0001>
module attributes {stable_mosaic.version = 11 : i64} {
  func.func @_conv1x1_bn_kernel(%arg0: i32, %arg1: memref<1200x196xf32, #tpu.memory_space<vmem>>, %arg2: memref<128x1200xf32, #tpu.memory_space<vmem>>, %arg3: memref<128x2xf32, #tpu.memory_space<vmem>>, %arg4: memref<128x196xf32, #tpu.memory_space<vmem>>) attributes {dimension_semantics = [#tpu.dimension_semantics<parallel>], iteration_bounds = array<i64: 2>, scalar_prefetch = 0 : i64, scratch_operands = 0 : i64, tpu.core_type = #tpu.core_type<tc>, window_params = [{pipeline_mode = #tpu.pipeline_mode<synchronous>, transform_indices = @transform_0, window_bounds = array<i64: 1200, 196>}, {transform_indices = @transform_1, window_bounds = array<i64: 128, 1200>}, {transform_indices = @transform_2, window_bounds = array<i64: 128, 2>}, {transform_indices = @transform_3, window_bounds = array<i64: 128, 196>}]} {
    %c0 = arith.constant 0 : index
    %c0_0 = arith.constant 0 : index
    %0 = vector.load %arg2[%c0, %c0_0] : memref<128x1200xf32, #tpu.memory_space<vmem>>, vector<128x1200xf32>
    %c0_1 = arith.constant 0 : index
    %c0_2 = arith.constant 0 : index
    %1 = vector.load %arg1[%c0_1, %c0_2] : memref<1200x196xf32, #tpu.memory_space<vmem>>, vector<1200x196xf32>
    %cst = arith.constant dense<0.000000e+00> : vector<128x196xf32>
    %2 = tpu.matmul %0, %1, %cst {dimension_numbers = #tpu.dot_dimension_numbers<[1], [0], [0], [1], [0, 0, 1, 1], [], []>} : vector<128x1200xf32>, vector<1200x196xf32>, vector<128x196xf32> -> vector<128x196xf32>
    %cst_3 = arith.constant dense<0.000000e+00> : vector<128xf32>
    %3 = vector.multi_reduction <add>, %2, %cst_3 [1] : vector<128x196xf32> to vector<128xf32>
    %4 = vector.shape_cast %3 : vector<128xf32> to vector<128x1xf32>
    %cst_4 = arith.constant 0.00510204071 : f32
    %5 = vector.broadcast %cst_4 : f32 to vector<128x1xf32>
    %6 = arith.mulf %4, %5 : vector<128x1xf32>
    %7 = arith.mulf %2, %2 : vector<128x196xf32>
    %cst_5 = arith.constant dense<0.000000e+00> : vector<128xf32>
    %8 = vector.multi_reduction <add>, %7, %cst_5 [1] : vector<128x196xf32> to vector<128xf32>
    %9 = vector.shape_cast %8 : vector<128xf32> to vector<128x1xf32>
    %cst_6 = arith.constant 0.00510204071 : f32
    %10 = vector.broadcast %cst_6 : f32 to vector<128x1xf32>
    %11 = arith.mulf %9, %10 : vector<128x1xf32>
    %12 = arith.mulf %6, %6 : vector<128x1xf32>
    %13 = arith.subf %11, %12 : vector<128x1xf32>
    %cst_7 = arith.constant 1.000000e-03 : f32
    %14 = vector.broadcast %cst_7 : f32 to vector<128x1xf32>
    %15 = arith.addf %13, %14 : vector<128x1xf32>
    %16 = math.rsqrt %15 : vector<128x1xf32>
    %c0_8 = arith.constant 0 : index
    %c0_9 = arith.constant 0 : index
    %17 = vector.load %arg3[%c0_8, %c0_9] : memref<128x2xf32, #tpu.memory_space<vmem>>, vector<128x1xf32>
    %c0_10 = arith.constant 0 : index
    %c1 = arith.constant 1 : index
    %18 = vector.load %arg3[%c0_10, %c1] : memref<128x2xf32, #tpu.memory_space<vmem>>, vector<128x1xf32>
    %19 = arith.mulf %17, %16 : vector<128x1xf32>
    %20 = arith.mulf %6, %19 : vector<128x1xf32>
    %21 = arith.subf %18, %20 : vector<128x1xf32>
    %22 = vector.broadcast %19 : vector<128x1xf32> to vector<128x196xf32>
    %23 = arith.mulf %2, %22 : vector<128x196xf32>
    %24 = vector.broadcast %21 : vector<128x1xf32> to vector<128x196xf32>
    %25 = arith.addf %23, %24 : vector<128x196xf32>
    %c0_11 = arith.constant 0 : index
    %c0_12 = arith.constant 0 : index
    %26 = vector.load %arg4[%c0_11, %c0_12] : memref<128x196xf32, #tpu.memory_space<vmem>>, vector<128x196xf32>
    tpu.vector_store %arg4[%c0_11, %c0_12], %25 {strides = array<i32>} : memref<128x196xf32, #tpu.memory_space<vmem>>, vector<128x196xf32>,
    return
  }
  func.func @transform_0(%arg0: i32) -> (i32, i32) {
    %c0_i32 = arith.constant 0 : i32
    %c0_i32_0 = arith.constant 0 : i32
    %c0_i32_1 = arith.constant 0 : i32
    return %c0_i32, %c0_i32_0 : i32, i32
  }
  func.func @transform_1(%arg0: i32) -> (i32, i32) {
    %c0_i32 = arith.constant 0 : i32
    %c0_i32_0 = arith.constant 0 : i32
    return %arg0, %c0_i32 : i32, i32
  }
  func.func @transform_2(%arg0: i32) -> (i32, i32) {
    %c0_i32 = arith.constant 0 : i32
    %c0_i32_0 = arith.constant 0 : i32
    return %arg0, %c0_i32 : i32, i32
  }
  func.func @transform_3(%arg0: i32) -> (i32, i32) {
    %c0_i32 = arith.constant 0 : i32
    %c0_i32_0 = arith.constant 0 : i32
    return %arg0, %c0_i32 : i32, i32
  }
}

</mosaic_0001>

<llo_original>
// kernel: conv1x1_bn.1
$region0: #{conv1x1_bn.1}
  #allocation0 [shape = 'u32[]', space=smem, size = 0x4, offset = 0x4, fixed_abs, tag = 'smem constant byte address 0x4 - core index']
  #allocation1 [shape = 'u32[144,128]{1,0:T(1,128)}', space=vmem, size = 0x12000, scoped, tag = 'internal scratch']
  %s0 = inlined_call_operand.vmem [shape: f32[1200,196], index: 0, kind: input, shape index: {}]
  %s1 = inlined_call_operand.vmem [shape: f32[256,1200], index: 1, kind: input, shape index: {}]
  %s2 = inlined_call_operand.vmem [shape: f32[256,2], index: 2, kind: input, shape index: {}]
  %s3 = inlined_call_operand.vmem [shape: f32[256,196], index: 3, kind: output, shape index: {}]
  %s4 = sld [smem:[#allocation0]]
  $region45: #{conv1x1_bn.1} parent=0
    _
  %s6 = ssub.s32 1, %s4
  %s7 = scalar_select 0, %s6, %s4
  loop: start=0, step=1, limit=4
  $region2: #{conv1x1_bn.1} parent=0 // loop_pre_header
    _
  $region3: #{conv1x1_bn.1} parent=0 // loop_header
    %s9 = sphi 0, %s13
    %p10 = scmp.ge.s32.totalorder %s9, 4
    %s17 = sphi 0, %s17
    %s19 = sphi 0, %s17
    %s20 = sphi 0, %s19
    %s34 = sphi 0, %s20
    %s40 = sphi 0, %s42
    %s43 = sphi 0, %s40
    %s44 = sphi 0, %s43
    %s60 = sphi 0, %s44
    %s66 = sphi 0, %s68
    %s69 = sphi 0, %s66
    %s70 = sphi 0, %s69
    %s86 = sphi 0, %s70
    %s92 = sphi 0, %s94
    %s95 = sphi 0, %s92
    %s96 = sphi 0, %s95
    %s112 = sphi 0, %s96
  $region4: #{conv1x1_bn.1} parent=0 // loop_header_branch
    %12 = sbr.rel (%p10) target = $region8
  $region5: #{conv1x1_bn.1} parent=0 // loop_body
    %s14 = ssub.s32 %s9, 1
    %s15 = ssub.s32 %s9, 2
    %s16 = sadd.s32 %s9, 1
    %s18 = sadd.s32 %s17, 1
    %p21 = scmp.eq.s32.totalorder %s9, 1
    %p22 = scmp.ne.s32.totalorder %s17, %s19
    %p23 = scmp.eq.s32.totalorder %s9, 0
    %p24 = por %p22, %p23
    %p25 = scmp.ne.s32.totalorder %s17, %s19
    %p26 = scmp.eq.s32.totalorder %s14, 1
    %p27 = por %p25, %p26
    %p28 = scmp.ne.s32.totalorder %s19, %s20
    %p29 = scmp.eq.s32.totalorder %s14, 0
    %p30 = por %p28, %p29
    %p31 = scmp.ne.s32.totalorder %s19, %s20
    %p32 = scmp.eq.s32.totalorder %s15, 1
    %p33 = por %p31, %p32
    %p35 = scmp.ne.s32.totalorder %s20, %s34
    %p36 = scmp.eq.s32.totalorder %s15, 0
    %p37 = por %p35, %p36
    %s38 = ssub.s32 %s9, %s16
    %p39 = scmp.eq.s32.totalorder %s38, 0
    %s41 = sadd.s32 %s40, 1
    %s42 = scalar_select %p39, %s40, %s41
    %p45 = pneg %p39
    %p46 = scmp.eq.s32.totalorder %s9, 1
    %p47 = por %p45, %p46
    %p48 = scmp.ne.s32.totalorder %s40, %s43
    %p49 = scmp.eq.s32.totalorder %s9, 0
    %p50 = por %p48, %p49
    %p51 = scmp.ne.s32.totalorder %s40, %s43
    %p52 = scmp.eq.s32.totalorder %s14, 1
    %p53 = por %p51, %p52
    %p54 = scmp.ne.s32.totalorder %s43, %s44
    %p55 = scmp.eq.s32.totalorder %s14, 0
    %p56 = por %p54, %p55
    %p57 = scmp.ne.s32.totalorder %s43, %s44
    %p58 = scmp.eq.s32.totalorder %s15, 1
    %p59 = por %p57, %p58
    %p61 = scmp.ne.s32.totalorder %s44, %s60
    %p62 = scmp.eq.s32.totalorder %s15, 0
    %p63 = por %p61, %p62
    %s64 = ssub.s32 %s9, %s16
    %p65 = scmp.eq.s32.totalorder %s64, 0
    %s67 = sadd.s32 %s66, 1
    %s68 = scalar_select %p65, %s66, %s67
    %p71 = pneg %p65
    %p72 = scmp.eq.s32.totalorder %s9, 1
    %p73 = por %p71, %p72
    %p74 = scmp.ne.s32.totalorder %s66, %s69
    %p75 = scmp.eq.s32.totalorder %s9, 0
    %p76 = por %p74, %p75
    %p77 = scmp.ne.s32.totalorder %s66, %s69
    %p78 = scmp.eq.s32.totalorder %s14, 1
    %p79 = por %p77, %p78
    %p80 = scmp.ne.s32.totalorder %s69, %s70
    %p81 = scmp.eq.s32.totalorder %s14, 0
    %p82 = por %p80, %p81
    %p83 = scmp.ne.s32.totalorder %s69, %s70
    %p84 = scmp.eq.s32.totalorder %s15, 1
    %p85 = por %p83, %p84
    %p87 = scmp.ne.s32.totalorder %s70, %s86
    %p88 = scmp.eq.s32.totalorder %s15, 0
    %p89 = por %p87, %p88
    %s90 = ssub.s32 %s9, %s16
    %p91 = scmp.eq.s32.totalorder %s90, 0
    %s93 = sadd.s32 %s92, 1
    %s94 = scalar_select %p91, %s92, %s93
    %p97 = pneg %p91
    %p98 = scmp.eq.s32.totalorder %s9, 1
    %p99 = por %p97, %p98
    %p100 = scmp.ne.s32.totalorder %s92, %s95
    %p101 = scmp.eq.s32.totalorder %s9, 0
    %p102 = por %p100, %p101
    %p103 = scmp.ne.s32.totalorder %s92, %s95
    %p104 = scmp.eq.s32.totalorder %s14, 1
    %p105 = por %p103, %p104
    %p106 = scmp.ne.s32.totalorder %s95, %s96
    %p107 = scmp.eq.s32.totalorder %s14, 0
    %p108 = por %p106, %p107
    %p109 = scmp.ne.s32.totalorder %s95, %s96
    %p110 = scmp.eq.s32.totalorder %s15, 1
    %p111 = por %p109, %p110
    %p113 = scmp.ne.s32.totalorder %s96, %s112
    %p114 = scmp.eq.s32.totalorder %s15, 0
    %p115 = por %p113, %p114
    %p116 = scmp.le.s32.totalorder 1, %s9
    %p117 = scmp.lt.s32.totalorder %s9, 3
    %p118 = pnand %p116, %p117
    %p119 = pneg %p118
    // Predicated region
    $region9: #{conv1x1_bn.1} parent=5 // pred_check
      _
    $region10: #{conv1x1_bn.1} parent=5 // pred_check_branch
      %121 = sbr.rel (%p118) target = $region12
    $region11: #{conv1x1_bn.1} parent=5 // pred_region
      %s122 = ssub.s32 %s9, 1
      // Predicated region
      $region13: #{conv1x1_bn.1} parent=11 // pred_check
        %p123 = pneg %p30
      $region14: #{conv1x1_bn.1} parent=11 // pred_check_branch
        %125 = sbr.rel (%p123) target = $region16
      $region15: #{conv1x1_bn.1} parent=11 // pred_region
        _
      $region16: #{conv1x1_bn.1} parent=11 // pred_fallthru
        _
    $region12: #{conv1x1_bn.1} parent=5 // pred_fallthru
      _
    %p126 = scmp.lt.s32.totalorder %s9, 2
    // Predicated region
    $region17: #{conv1x1_bn.1} parent=5 // pred_check
      %p127 = pneg %p126
    $region18: #{conv1x1_bn.1} parent=5 // pred_check_branch
      %129 = sbr.rel (%p127) target = $region20
    $region19: #{conv1x1_bn.1} parent=5 // pred_region
      // Predicated region
      $region21: #{conv1x1_bn.1} parent=19 // pred_check
        %p130 = pneg %p50
      $region22: #{conv1x1_bn.1} parent=19 // pred_check_branch
        %132 = sbr.rel (%p130) target = $region24
      $region23: #{conv1x1_bn.1} parent=19 // pred_region
        %s133 = smul.u32 16, %s9
        %p134 = scmp.lt.s32.totalorder %s133, 31
        %s135 = scalar_select %p134, %s133, 31
        %s136 = smul.addr %s135, 10
        %s137 = smul.addr %s136, 8
        %s138 = scalar_lea.vmem %s1, %s137
        %s139 = smul.u32 16, %s9
      $region24: #{conv1x1_bn.1} parent=19 // pred_fallthru
        _
      // Predicated region
      $region25: #{conv1x1_bn.1} parent=19 // pred_check
        %p140 = pneg %p76
      $region26: #{conv1x1_bn.1} parent=19 // pred_check_branch
        %142 = sbr.rel (%p140) target = $region28
      $region27: #{conv1x1_bn.1} parent=19 // pred_region
        %s143 = smul.u32 16, %s9
        %p144 = scmp.lt.s32.totalorder %s143, 31
        %s145 = scalar_select %p144, %s143, 31
        %s146 = smul.addr %s145, 8
        %s147 = scalar_lea.vmem %s2, %s146
        %s148 = smul.u32 16, %s9
      $region28: #{conv1x1_bn.1} parent=19 // pred_fallthru
        _
    $region20: #{conv1x1_bn.1} parent=5 // pred_fallthru
      _
    %p149 = scmp.le.s32.totalorder 1, %s9
    %p150 = scmp.lt.s32.totalorder %s9, 3
    %p151 = pnand %p149, %p150
    %p152 = pneg %p151
    // Predicated region
    $region29: #{conv1x1_bn.1} parent=5 // pred_check
      _
    $region30: #{conv1x1_bn.1} parent=5 // pred_check_branch
      %154 = sbr.rel (%p151) target = $region32
    $region31: #{conv1x1_bn.1} parent=5 // pred_region
      %s155 = ssub.s32 %s9, 1
      %p156 = pneg %p30
      %p157 = pneg %p27
      %s158 = smul.u32 16, %s14
      %p159 = scmp.lt.s32.totalorder %s158, 31
      %s160 = scalar_select %p159, %s158, 31
      %s161 = smul.addr %s160, 10
      %s162 = smul.addr %s161, 8
      %s163 = scalar_lea.vmem %s1, %s162
      %p164 = pneg %p56
      %p165 = pneg %p53
      %s166 = smul.u32 16, %s14
      %p167 = scmp.lt.s32.totalorder %s166, 31
      %s168 = scalar_select %p167, %s166, 31
      %s169 = smul.addr %s168, 8
      %s170 = scalar_lea.vmem %s2, %s169
      %p171 = pneg %p82
      %p172 = pneg %p79
      %p173 = pneg %p108
      %p174 = pneg %p105
      %s175 = smul.u32 16, %s14
      %p176 = scmp.lt.s32.totalorder %s175, 31
      %s177 = scalar_select %p176, %s175, 31
      %s178 = smul.addr %s177, 2
      %s179 = smul.addr %s178, 8
      %s180 = scalar_lea.vmem %s3, %s179
      %s181 = smul.u32 16, %s14
      %p182 = scmp.lt.s32.totalorder %s181, 31
      %s183 = scalar_select %p182, %s181, 31
      %s184 = smul.addr %s183, 10
      %s185 = smul.addr %s184, 8
      %s186 = scalar_lea.vmem %s1, %s185
      %s187 = smul.u32 16, %s14
      %s188 = smul.u32 16, %s14
      %p189 = scmp.lt.s32.totalorder %s188, 31
      %s190 = scalar_select %p189, %s188, 31
      %s191 = smul.addr %s190, 8
      %s192 = scalar_lea.vmem %s2, %s191
      %s193 = smul.u32 16, %s14
      %s194 = smul.u32 16, %s14
      %p195 = scmp.lt.s32.totalorder %s194, 31
      %s196 = scalar_select %p195, %s194, 31
      %s197 = smul.addr %s196, 2
      %s198 = smul.addr %s197, 8
      %s199 = scalar_lea.vmem %s3, %s198
      %s200 = smul.u32 16, %s14
      %v201 = vld [vmem:[%s186] sm:$0xff]
      %v202 = vld [vmem:[%s186 + $0x8] sm:$0xff]
      %v203 = vld [vmem:[%s186 + $0x10] sm:$0xff]
      %v204 = vld [vmem:[%s186 + $0x18] sm:$0xff]
      %v205 = vld [vmem:[%s186 + $0x20] sm:$0xff]
      %v206 = vld [vmem:[%s186 + $0x28] sm:$0xff]
      %v207 = vld [vmem:[%s186 + $0x30] sm:$0xff]
      %v208 = vld [vmem:[%s186 + $0x38] sm:$0xff]
      %v209 = vld [vmem:[%s186 + $0x40] sm:$0xff]
      %v210 = vld [vmem:[%s186 + $0x48] sm:$0xff]
      %v211 = vld [vmem:[%s186 + $0x50] sm:$0xff]
      %v212 = vld [vmem:[%s186 + $0x58] sm:$0xff]
      %v213 = vld [vmem:[%s186 + $0x60] sm:$0xff]
      %v214 = vld [vmem:[%s186 + $0x68] sm:$0xff]
      %v215 = vld [vmem:[%s186 + $0x70] sm:$0xff]
      %v216 = vld [vmem:[%s186 + $0x78] sm:$0xff]
      %v217 = vld [vmem:[%s186 + $0x80] sm:$0xff]
      %v218 = vld [vmem:[%s186 + $0x88] sm:$0xff]
      %v219 = vld [vmem:[%s186 + $0x90] sm:$0xff]
      %v220 = vld [vmem:[%s186 + $0x98] sm:$0xff]
      %v221 = vld [vmem:[%s186 + $0xa0] sm:$0xff]
      %v222 = vld [vmem:[%s186 + $0xa8] sm:$0xff]
      %v223 = vld [vmem:[%s186 + $0xb0] sm:$0xff]
      %v224 = vld [vmem:[%s186 + $0xb8] sm:$0xff]
      %v225 = vld [vmem:[%s186 + $0xc0] sm:$0xff]
      %v226 = vld [vmem:[%s186 + $0xc8] sm:$0xff]
      %v227 = vld [vmem:[%s186 + $0xd0] sm:$0xff]
      %v228 = vld [vmem:[%s186 + $0xd8] sm:$0xff]
      %v229 = vld [vmem:[%s186 + $0xe0] sm:$0xff]
      %v230 = vld [vmem:[%s186 + $0xe8] sm:$0xff]
      %v231 = vld [vmem:[%s186 + $0xf0] sm:$0xff]
      %v232 = vld [vmem:[%s186 + $0xf8] sm:$0xff]
      %v233 = vld [vmem:[%s186 + $0x100] sm:$0xff]
      %v234 = vld [vmem:[%s186 + $0x108] sm:$0xff]
      %v235 = vld [vmem:[%s186 + $0x110] sm:$0xff]
      %v236 = vld [vmem:[%s186 + $0x118] sm:$0xff]
      %v237 = vld [vmem:[%s186 + $0x120] sm:$0xff]
      %v238 = vld [vmem:[%s186 + $0x128] sm:$0xff]
      %v239 = vld [vmem:[%s186 + $0x130] sm:$0xff]
      %v240 = vld [vmem:[%s186 + $0x138] sm:$0xff]
      %v241 = vld [vmem:[%s186 + $0x140] sm:$0xff]
      %v242 = vld [vmem:[%s186 + $0x148] sm:$0xff]
      %v243 = vld [vmem:[%s186 + $0x150] sm:$0xff]
      %v244 = vld [vmem:[%s186 + $0x158] sm:$0xff]
      %v245 = vld [vmem:[%s186 + $0x160] sm:$0xff]
      %v246 = vld [vmem:[%s186 + $0x168] sm:$0xff]
      %v247 = vld [vmem:[%s186 + $0x170] sm:$0xff]
      %v248 = vld [vmem:[%s186 + $0x178] sm:$0xff]
      %v249 = vld [vmem:[%s186 + $0x180] sm:$0xff]
      %v250 = vld [vmem:[%s186 + $0x188] sm:$0xff]
      %v251 = vld [vmem:[%s186 + $0x190] sm:$0xff]
      %v252 = vld [vmem:[%s186 + $0x198] sm:$0xff]
      %v253 = vld [vmem:[%s186 + $0x1a0] sm:$0xff]
      %v254 = vld [vmem:[%s186 + $0x1a8] sm:$0xff]
      %v255 = vld [vmem:[%s186 + $0x1b0] sm:$0xff]
      %v256 = vld [vmem:[%s186 + $0x1b8] sm:$0xff]
      %v257 = vld [vmem:[%s186 + $0x1c0] sm:$0xff]
      %v258 = vld [vmem:[%s186 + $0x1c8] sm:$0xff]
      %v259 = vld [vmem:[%s186 + $0x1d0] sm:$0xff]
      %v260 = vld [vmem:[%s186 + $0x1d8] sm:$0xff]
      %v261 = vld [vmem:[%s186 + $0x1e0] sm:$0xff]
      %v262 = vld [vmem:[%s186 + $0x1e8] sm:$0xff]
      %v263 = vld [vmem:[%s186 + $0x1f0] sm:$0xff]
      %v264 = vld [vmem:[%s186 + $0x1f8] sm:$0xff]
      %v265 = vld [vmem:[%s186 + $0x200] sm:$0xff]
      %v266 = vld [vmem:[%s186 + $0x208] sm:$0xff]
      %v267 = vld [vmem:[%s186 + $0x210] sm:$0xff]
      %v268 = vld [vmem:[%s186 + $0x218] sm:$0xff]
      %v269 = vld [vmem:[%s186 + $0x220] sm:$0xff]
      %v270 = vld [vmem:[%s186 + $0x228] sm:$0xff]
      %v271 = vld [vmem:[%s186 + $0x230] sm:$0xff]
      %v272 = vld [vmem:[%s186 + $0x238] sm:$0xff]
      %v273 = vld [vmem:[%s186 + $0x240] sm:$0xff]
      %v274 = vld [vmem:[%s186 + $0x248] sm:$0xff]
      %v275 = vld [vmem:[%s186 + $0x250] sm:$0xff]
      %v276 = vld [vmem:[%s186 + $0x258] sm:$0xff]
      %v277 = vld [vmem:[%s186 + $0x260] sm:$0xff]
      %v278 = vld [vmem:[%s186 + $0x268] sm:$0xff]
      %v279 = vld [vmem:[%s186 + $0x270] sm:$0xff]
      %v280 = vld [vmem:[%s186 + $0x278] sm:$0xff]
      %v281 = vld [vmem:[%s186 + $0x280] sm:$0xff]
      %v282 = vld [vmem:[%s186 + $0x288] sm:$0xff]
      %v283 = vld [vmem:[%s186 + $0x290] sm:$0xff]
      %v284 = vld [vmem:[%s186 + $0x298] sm:$0xff]
      %v285 = vld [vmem:[%s186 + $0x2a0] sm:$0xff]
      %v286 = vld [vmem:[%s186 + $0x2a8] sm:$0xff]
      %v287 = vld [vmem:[%s186 + $0x2b0] sm:$0xff]
      %v288 = vld [vmem:[%s186 + $0x2b8] sm:$0xff]
      %v289 = vld [vmem:[%s186 + $0x2c0] sm:$0xff]
      %v290 = vld [vmem:[%s186 + $0x2c8] sm:$0xff]
      %v291 = vld [vmem:[%s186 + $0x2d0] sm:$0xff]
      %v292 = vld [vmem:[%s186 + $0x2d8] sm:$0xff]
      %v293 = vld [vmem:[%s186 + $0x2e0] sm:$0xff]
      %v294 = vld [vmem:[%s186 + $0x2e8] sm:$0xff]
      %v295 = vld [vmem:[%s186 + $0x2f0] sm:$0xff]
      %v296 = vld [vmem:[%s186 + $0x2f8] sm:$0xff]
      %v297 = vld [vmem:[%s186 + $0x300] sm:$0xff]
      %v298 = vld [vmem:[%s186 + $0x308] sm:$0xff]
      %v299 = vld [vmem:[%s186 + $0x310] sm:$0xff]
      %v300 = vld [vmem:[%s186 + $0x318] sm:$0xff]
      %v301 = vld [vmem:[%s186 + $0x320] sm:$0xff]
      %v302 = vld [vmem:[%s186 + $0x328] sm:$0xff]
      %v303 = vld [vmem:[%s186 + $0x330] sm:$0xff]
      %v304 = vld [vmem:[%s186 + $0x338] sm:$0xff]
      %v305 = vld [vmem:[%s186 + $0x340] sm:$0xff]
      %v306 = vld [vmem:[%s186 + $0x348] sm:$0xff]
      %v307 = vld [vmem:[%s186 + $0x350] sm:$0xff]
      %v308 = vld [vmem:[%s186 + $0x358] sm:$0xff]
      %v309 = vld [vmem:[%s186 + $0x360] sm:$0xff]
      %v310 = vld [vmem:[%s186 + $0x368] sm:$0xff]
      %v311 = vld [vmem:[%s186 + $0x370] sm:$0xff]
      %v312 = vld [vmem:[%s186 + $0x378] sm:$0xff]
      %v313 = vld [vmem:[%s186 + $0x380] sm:$0xff]
      %v314 = vld [vmem:[%s186 + $0x388] sm:$0xff]
      %v315 = vld [vmem:[%s186 + $0x390] sm:$0xff]
      %v316 = vld [vmem:[%s186 + $0x398] sm:$0xff]
      %v317 = vld [vmem:[%s186 + $0x3a0] sm:$0xff]
      %v318 = vld [vmem:[%s186 + $0x3a8] sm:$0xff]
      %v319 = vld [vmem:[%s186 + $0x3b0] sm:$0xff]
      %v320 = vld [vmem:[%s186 + $0x3b8] sm:$0xff]
      %v321 = vld [vmem:[%s186 + $0x3c0] sm:$0xff]
      %v322 = vld [vmem:[%s186 + $0x3c8] sm:$0xff]
      %v323 = vld [vmem:[%s186 + $0x3d0] sm:$0xff]
      %v324 = vld [vmem:[%s186 + $0x3d8] sm:$0xff]
      %v325 = vld [vmem:[%s186 + $0x3e0] sm:$0xff]
      %v326 = vld [vmem:[%s186 + $0x3e8] sm:$0xff]
      %v327 = vld [vmem:[%s186 + $0x3f0] sm:$0xff]
      %v328 = vld [vmem:[%s186 + $0x3f8] sm:$0xff]
      %v329 = vld [vmem:[%s186 + $0x400] sm:$0xff]
      %v330 = vld [vmem:[%s186 + $0x408] sm:$0xff]
      %v331 = vld [vmem:[%s186 + $0x410] sm:$0xff]
      %v332 = vld [vmem:[%s186 + $0x418] sm:$0xff]
      %v333 = vld [vmem:[%s186 + $0x420] sm:$0xff]
      %v334 = vld [vmem:[%s186 + $0x428] sm:$0xff]
      %v335 = vld [vmem:[%s186 + $0x430] sm:$0xff]
      %v336 = vld [vmem:[%s186 + $0x438] sm:$0xff]
      %v337 = vld [vmem:[%s186 + $0x440] sm:$0xff]
      %v338 = vld [vmem:[%s186 + $0x448] sm:$0xff]
      %v339 = vld [vmem:[%s186 + $0x450] sm:$0xff]
      %v340 = vld [vmem:[%s186 + $0x458] sm:$0xff]
      %v341 = vld [vmem:[%s186 + $0x460] sm:$0xff]
      %v342 = vld [vmem:[%s186 + $0x468] sm:$0xff]
      %v343 = vld [vmem:[%s186 + $0x470] sm:$0xff]
      %v344 = vld [vmem:[%s186 + $0x478] sm:$0xff]
      %v345 = vld [vmem:[%s186 + $0x480] sm:$0xff]
      %v346 = vld [vmem:[%s186 + $0x488] sm:$0xff]
      %v347 = vld [vmem:[%s186 + $0x490] sm:$0xff]
      %v348 = vld [vmem:[%s186 + $0x498] sm:$0xff]
      %v349 = vld [vmem:[%s186 + $0x4a0] sm:$0xff]
      %v350 = vld [vmem:[%s186 + $0x4a8] sm:$0xff]
      %v351 = vld [vmem:[%s186 + $0x4b0] sm:$0xff]
      %v352 = vld [vmem:[%s186 + $0x4b8] sm:$0xff]
      %v353 = vld [vmem:[%s186 + $0x4c0] sm:$0xff]
      %v354 = vld [vmem:[%s186 + $0x4c8] sm:$0xff]
      %v355 = vld [vmem:[%s186 + $0x4d0] sm:$0xff]
      %v356 = vld [vmem:[%s186 + $0x4d8] sm:$0xff]
      %v357 = vld [vmem:[%s186 + $0x4e0] sm:$0xff]
      %v358 = vld [vmem:[%s186 + $0x4e8] sm:$0xff]
      %v359 = vld [vmem:[%s186 + $0x4f0] sm:$0xff]
      %v360 = vld [vmem:[%s186 + $0x4f8] sm:$0xff]
      %v361 = vld [vmem:[%s0] sm:$0xff]
      %v362 = vld [vmem:[%s0 + $0x8] sm:$0xff]
      %v363 = vld [vmem:[%s0 + $0x10] sm:$0xff]
      %v364 = vld [vmem:[%s0 + $0x18] sm:$0xff]
      %v365 = vld [vmem:[%s0 + $0x20] sm:$0xff]
      %v366 = vld [vmem:[%s0 + $0x28] sm:$0xff]
      %v367 = vld [vmem:[%s0 + $0x30] sm:$0xff]
      %v368 = vld [vmem:[%s0 + $0x38] sm:$0xff]
      %v369 = vld [vmem:[%s0 + $0x40] sm:$0xff]
      %v370 = vld [vmem:[%s0 + $0x48] sm:$0xff]
      %v371 = vld [vmem:[%s0 + $0x50] sm:$0xff]
      %v372 = vld [vmem:[%s0 + $0x58] sm:$0xff]
      %v373 = vld [vmem:[%s0 + $0x60] sm:$0xff]
      %v374 = vld [vmem:[%s0 + $0x68] sm:$0xff]
      %v375 = vld [vmem:[%s0 + $0x70] sm:$0xff]
      %v376 = vld [vmem:[%s0 + $0x78] sm:$0xff]
      %v377 = vld [vmem:[%s0 + $0x80] sm:$0xff]
      %v378 = vld [vmem:[%s0 + $0x88] sm:$0xff]
      %v379 = vld [vmem:[%s0 + $0x90] sm:$0xff]
      %v380 = vld [vmem:[%s0 + $0x98] sm:$0xff]
      %v381 = vld [vmem:[%s0 + $0xa0] sm:$0xff]
      %v382 = vld [vmem:[%s0 + $0xa8] sm:$0xff]
      %v383 = vld [vmem:[%s0 + $0xb0] sm:$0xff]
      %v384 = vld [vmem:[%s0 + $0xb8] sm:$0xff]
      %v385 = vld [vmem:[%s0 + $0xc0] sm:$0xff]
      %v386 = vld [vmem:[%s0 + $0xc8] sm:$0xff]
      %v387 = vld [vmem:[%s0 + $0xd0] sm:$0xff]
      %v388 = vld [vmem:[%s0 + $0xd8] sm:$0xff]
      %v389 = vld [vmem:[%s0 + $0xe0] sm:$0xff]
      %v390 = vld [vmem:[%s0 + $0xe8] sm:$0xff]
      %v391 = vld [vmem:[%s0 + $0xf0] sm:$0xff]
      %v392 = vld [vmem:[%s0 + $0xf8] sm:$0xff]
      %v393 = vld [vmem:[%s0 + $0x100] sm:$0xff]
      %v394 = vld [vmem:[%s0 + $0x108] sm:$0xff]
      %v395 = vld [vmem:[%s0 + $0x110] sm:$0xff]
      %v396 = vld [vmem:[%s0 + $0x118] sm:$0xff]
      %v397 = vld [vmem:[%s0 + $0x120] sm:$0xff]
      %v398 = vld [vmem:[%s0 + $0x128] sm:$0xff]
      %v399 = vld [vmem:[%s0 + $0x130] sm:$0xff]
      %v400 = vld [vmem:[%s0 + $0x138] sm:$0xff]
      %v401 = vld [vmem:[%s0 + $0x140] sm:$0xff]
      %v402 = vld [vmem:[%s0 + $0x148] sm:$0xff]
      %v403 = vld [vmem:[%s0 + $0x150] sm:$0xff]
      %v404 = vld [vmem:[%s0 + $0x158] sm:$0xff]
      %v405 = vld [vmem:[%s0 + $0x160] sm:$0xff]
      %v406 = vld [vmem:[%s0 + $0x168] sm:$0xff]
      %v407 = vld [vmem:[%s0 + $0x170] sm:$0xff]
      %v408 = vld [vmem:[%s0 + $0x178] sm:$0xff]
      %v409 = vld [vmem:[%s0 + $0x180] sm:$0xff]
      %v410 = vld [vmem:[%s0 + $0x188] sm:$0xff]
      %v411 = vld [vmem:[%s0 + $0x190] sm:$0xff]
      %v412 = vld [vmem:[%s0 + $0x198] sm:$0xff]
      %v413 = vld [vmem:[%s0 + $0x1a0] sm:$0xff]
      %v414 = vld [vmem:[%s0 + $0x1a8] sm:$0xff]
      %v415 = vld [vmem:[%s0 + $0x1b0] sm:$0xff]
      %v416 = vld [vmem:[%s0 + $0x1b8] sm:$0xff]
      %v417 = vld [vmem:[%s0 + $0x1c0] sm:$0xff]
      %v418 = vld [vmem:[%s0 + $0x1c8] sm:$0xff]
      %v419 = vld [vmem:[%s0 + $0x1d0] sm:$0xff]
      %v420 = vld [vmem:[%s0 + $0x1d8] sm:$0xff]
      %v421 = vld [vmem:[%s0 + $0x1e0] sm:$0xff]
      %v422 = vld [vmem:[%s0 + $0x1e8] sm:$0xff]
      %v423 = vld [vmem:[%s0 + $0x1f0] sm:$0xff]
      %v424 = vld [vmem:[%s0 + $0x1f8] sm:$0xff]
      %v425 = vld [vmem:[%s0 + $0x200] sm:$0xff]
      %v426 = vld [vmem:[%s0 + $0x208] sm:$0xff]
      %v427 = vld [vmem:[%s0 + $0x210] sm:$0xff]
      %v428 = vld [vmem:[%s0 + $0x218] sm:$0xff]
      %v429 = vld [vmem:[%s0 + $0x220] sm:$0xff]
      %v430 = vld [vmem:[%s0 + $0x228] sm:$0xff]
      %v431 = vld [vmem:[%s0 + $0x230] sm:$0xff]
      %v432 = vld [vmem:[%s0 + $0x238] sm:$0xff]
      %v433 = vld [vmem:[%s0 + $0x240] sm:$0xff]
      %v434 = vld [vmem:[%s0 + $0x248] sm:$0xff]
      %v435 = vld [vmem:[%s0 + $0x250] sm:$0xff]
      %v436 = vld [vmem:[%s0 + $0x258] sm:$0xff]
      %v437 = vld [vmem:[%s0 + $0x260] sm:$0xff]
      %v438 = vld [vmem:[%s0 + $0x268] sm:$0xff]
      %v439 = vld [vmem:[%s0 + $0x270] sm:$0xff]
      %v440 = vld [vmem:[%s0 + $0x278] sm:$0xff]
      %v441 = vld [vmem:[%s0 + $0x280] sm:$0xff]
      %v442 = vld [vmem:[%s0 + $0x288] sm:$0xff]
      %v443 = vld [vmem:[%s0 + $0x290] sm:$0xff]
      %v444 = vld [vmem:[%s0 + $0x298] sm:$0xff]
      %v445 = vld [vmem:[%s0 + $0x2a0] sm:$0xff]
      %v446 = vld [vmem:[%s0 + $0x2a8] sm:$0xff]
      %v447 = vld [vmem:[%s0 + $0x2b0] sm:$0xff]
      %v448 = vld [vmem:[%s0 + $0x2b8] sm:$0xff]
      %v449 = vld [vmem:[%s0 + $0x2c0] sm:$0xff]
      %v450 = vld [vmem:[%s0 + $0x2c8] sm:$0xff]
      %v451 = vld [vmem:[%s0 + $0x2d0] sm:$0xff]
      %v452 = vld [vmem:[%s0 + $0x2d8] sm:$0xff]
      %v453 = vld [vmem:[%s0 + $0x2e0] sm:$0xff]
      %v454 = vld [vmem:[%s0 + $0x2e8] sm:$0xff]
      %v455 = vld [vmem:[%s0 + $0x2f0] sm:$0xff]
      %v456 = vld [vmem:[%s0 + $0x2f8] sm:$0xff]
      %v457 = vld [vmem:[%s0 + $0x300] sm:$0xff]
      %v458 = vld [vmem:[%s0 + $0x308] sm:$0xff]
      %v459 = vld [vmem:[%s0 + $0x310] sm:$0xff]
      %v460 = vld [vmem:[%s0 + $0x318] sm:$0xff]
      %v461 = vld [vmem:[%s0 + $0x320] sm:$0xff]
      %v462 = vld [vmem:[%s0 + $0x328] sm:$0xff]
      %v463 = vld [vmem:[%s0 + $0x330] sm:$0xff]
      %v464 = vld [vmem:[%s0 + $0x338] sm:$0xff]
      %v465 = vld [vmem:[%s0 + $0x340] sm:$0xff]
      %v466 = vld [vmem:[%s0 + $0x348] sm:$0xff]
      %v467 = vld [vmem:[%s0 + $0x350] sm:$0xff]
      %v468 = vld [vmem:[%s0 + $0x358] sm:$0xff]
      %v469 = vld [vmem:[%s0 + $0x360] sm:$0xff]
      %v470 = vld [vmem:[%s0 + $0x368] sm:$0xff]
      %v471 = vld [vmem:[%s0 + $0x370] sm:$0xff]
      %v472 = vld [vmem:[%s0 + $0x378] sm:$0xff]
      %v473 = vld [vmem:[%s0 + $0x380] sm:$0xff]
      %v474 = vld [vmem:[%s0 + $0x388] sm:$0xff]
      %v475 = vld [vmem:[%s0 + $0x390] sm:$0xff]
      %v476 = vld [vmem:[%s0 + $0x398] sm:$0xff]
      %v477 = vld [vmem:[%s0 + $0x3a0] sm:$0xff]
      %v478 = vld [vmem:[%s0 + $0x3a8] sm:$0xff]
      %v479 = vld [vmem:[%s0 + $0x3b0] sm:$0xff]
      %v480 = vld [vmem:[%s0 + $0x3b8] sm:$0xff]
      %v481 = vld [vmem:[%s0 + $0x3c0] sm:$0xff]
      %v482 = vld [vmem:[%s0 + $0x3c8] sm:$0xff]
      %v483 = vld [vmem:[%s0 + $0x3d0] sm:$0xff]
      %v484 = vld [vmem:[%s0 + $0x3d8] sm:$0xff]
      %v485 = vld [vmem:[%s0 + $0x3e0] sm:$0xff]
      %v486 = vld [vmem:[%s0 + $0x3e8] sm:$0xff]
      %v487 = vld [vmem:[%s0 + $0x3f0] sm:$0xff]
      %v488 = vld [vmem:[%s0 + $0x3f8] sm:$0xff]
      %v489 = vld [vmem:[%s0 + $0x400] sm:$0xff]
      %v490 = vld [vmem:[%s0 + $0x408] sm:$0xff]
      %v491 = vld [vmem:[%s0 + $0x410] sm:$0xff]
      %v492 = vld [vmem:[%s0 + $0x418] sm:$0xff]
      %v493 = vld [vmem:[%s0 + $0x420] sm:$0xff]
      %v494 = vld [vmem:[%s0 + $0x428] sm:$0xff]
      %v495 = vld [vmem:[%s0 + $0x430] sm:$0xff]
      %v496 = vld [vmem:[%s0 + $0x438] sm:$0xff]
      %v497 = vld [vmem:[%s0 + $0x440] sm:$0xff]
      %v498 = vld [vmem:[%s0 + $0x448] sm:$0xff]
      %v499 = vld [vmem:[%s0 + $0x450] sm:$0xff]
      %v500 = vld [vmem:[%s0 + $0x458] sm:$0xff]
      %v501 = vld [vmem:[%s0 + $0x460] sm:$0xff]
      %v502 = vld [vmem:[%s0 + $0x468] sm:$0xff]
      %v503 = vld [vmem:[%s0 + $0x470] sm:$0xff]
      %v504 = vld [vmem:[%s0 + $0x478] sm:$0xff]
      %v505 = vld [vmem:[%s0 + $0x480] sm:$0xff]
      %v506 = vld [vmem:[%s0 + $0x488] sm:$0xff]
      %v507 = vld [vmem:[%s0 + $0x490] sm:$0xff]
      %v508 = vld [vmem:[%s0 + $0x498] sm:$0xff]
      %v509 = vld [vmem:[%s0 + $0x4a0] sm:$0xff]
      %v510 = vld [vmem:[%s0 + $0x4a8] sm:$0xff]
      %v511 = vld [vmem:[%s0 + $0x4b0] sm:$0xff]
      %v512 = vld [vmem:[%s0 + $0x4b8] sm:$0xff]
      %v513 = vld [vmem:[%s0 + $0x4c0] sm:$0xff]
      %v514 = vld [vmem:[%s0 + $0x4c8] sm:$0xff]
      %v515 = vld [vmem:[%s0 + $0x4d0] sm:$0xff]
      %v516 = vld [vmem:[%s0 + $0x4d8] sm:$0xff]
      %v517 = vld [vmem:[%s0 + $0x4e0] sm:$0xff]
      %v518 = vld [vmem:[%s0 + $0x4e8] sm:$0xff]
      %v519 = vld [vmem:[%s0 + $0x4f0] sm:$0xff]
      %v520 = vld [vmem:[%s0 + $0x4f8] sm:$0xff]
      %v521 = vld [vmem:[%s0 + $0x500] sm:$0xff]
      %v522 = vld [vmem:[%s0 + $0x508] sm:$0xff]
      %v523 = vld [vmem:[%s0 + $0x510] sm:$0xff]
      %v524 = vld [vmem:[%s0 + $0x518] sm:$0xff]
      %v525 = vld [vmem:[%s0 + $0x520] sm:$0xff]
      %v526 = vld [vmem:[%s0 + $0x528] sm:$0xff]
      %v527 = vld [vmem:[%s0 + $0x530] sm:$0xff]
      %v528 = vld [vmem:[%s0 + $0x538] sm:$0xff]
      %v529 = vld [vmem:[%s0 + $0x540] sm:$0xff]
      %v530 = vld [vmem:[%s0 + $0x548] sm:$0xff]
      %v531 = vld [vmem:[%s0 + $0x550] sm:$0xff]
      %v532 = vld [vmem:[%s0 + $0x558] sm:$0xff]
      %v533 = vld [vmem:[%s0 + $0x560] sm:$0xff]
      %v534 = vld [vmem:[%s0 + $0x568] sm:$0xff]
      %v535 = vld [vmem:[%s0 + $0x570] sm:$0xff]
      %v536 = vld [vmem:[%s0 + $0x578] sm:$0xff]
      %v537 = vld [vmem:[%s0 + $0x580] sm:$0xff]
      %v538 = vld [vmem:[%s0 + $0x588] sm:$0xff]
      %v539 = vld [vmem:[%s0 + $0x590] sm:$0xff]
      %v540 = vld [vmem:[%s0 + $0x598] sm:$0xff]
      %v541 = vld [vmem:[%s0 + $0x5a0] sm:$0xff]
      %v542 = vld [vmem:[%s0 + $0x5a8] sm:$0xff]
      %v543 = vld [vmem:[%s0 + $0x5b0] sm:$0xff]
      %v544 = vld [vmem:[%s0 + $0x5b8] sm:$0xff]
      %v545 = vld [vmem:[%s0 + $0x5c0] sm:$0xff]
      %v546 = vld [vmem:[%s0 + $0x5c8] sm:$0xff]
      %v547 = vld [vmem:[%s0 + $0x5d0] sm:$0xff]
      %v548 = vld [vmem:[%s0 + $0x5d8] sm:$0xff]
      %v549 = vld [vmem:[%s0 + $0x5e0] sm:$0xff]
      %v550 = vld [vmem:[%s0 + $0x5e8] sm:$0xff]
      %v551 = vld [vmem:[%s0 + $0x5f0] sm:$0xff]
      %v552 = vld [vmem:[%s0 + $0x5f8] sm:$0xff]
      %v553 = vld [vmem:[%s0 + $0x600] sm:$0xff]
      %v554 = vld [vmem:[%s0 + $0x608] sm:$0xff]
      %v555 = vld [vmem:[%s0 + $0x610] sm:$0xff]
      %v556 = vld [vmem:[%s0 + $0x618] sm:$0xff]
      %v557 = vld [vmem:[%s0 + $0x620] sm:$0xff]
      %v558 = vld [vmem:[%s0 + $0x628] sm:$0xff]
      %v559 = vld [vmem:[%s0 + $0x630] sm:$0xff]
      %v560 = vld [vmem:[%s0 + $0x638] sm:$0xff]
      %v561 = vld [vmem:[%s0 + $0x640] sm:$0xff]
      %v562 = vld [vmem:[%s0 + $0x648] sm:$0xff]
      %v563 = vld [vmem:[%s0 + $0x650] sm:$0xff]
      %v564 = vld [vmem:[%s0 + $0x658] sm:$0xff]
      %v565 = vld [vmem:[%s0 + $0x660] sm:$0xff]
      %v566 = vld [vmem:[%s0 + $0x668] sm:$0xff]
      %v567 = vld [vmem:[%s0 + $0x670] sm:$0xff]
      %v568 = vld [vmem:[%s0 + $0x678] sm:$0xff]
      %v569 = vld [vmem:[%s0 + $0x680] sm:$0xff]
      %v570 = vld [vmem:[%s0 + $0x688] sm:$0xff]
      %v571 = vld [vmem:[%s0 + $0x690] sm:$0xff]
      %v572 = vld [vmem:[%s0 + $0x698] sm:$0xff]
      %v573 = vld [vmem:[%s0 + $0x6a0] sm:$0xff]
      %v574 = vld [vmem:[%s0 + $0x6a8] sm:$0xff]
      %v575 = vld [vmem:[%s0 + $0x6b0] sm:$0xff]
      %v576 = vld [vmem:[%s0 + $0x6b8] sm:$0xff]
      %v577 = vld [vmem:[%s0 + $0x6c0] sm:$0xff]
      %v578 = vld [vmem:[%s0 + $0x6c8] sm:$0xff]
      %v579 = vld [vmem:[%s0 + $0x6d0] sm:$0xff]
      %v580 = vld [vmem:[%s0 + $0x6d8] sm:$0xff]
      %v581 = vld [vmem:[%s0 + $0x6e0] sm:$0xff]
      %v582 = vld [vmem:[%s0 + $0x6e8] sm:$0xff]
      %v583 = vld [vmem:[%s0 + $0x6f0] sm:$0xff]
      %v584 = vld [vmem:[%s0 + $0x6f8] sm:$0xff]
      %v585 = vld [vmem:[%s0 + $0x700] sm:$0xff]
      %v586 = vld [vmem:[%s0 + $0x708] sm:$0xff]
      %v587 = vld [vmem:[%s0 + $0x710] sm:$0xff]
      %v588 = vld [vmem:[%s0 + $0x718] sm:$0xff]
      %v589 = vld [vmem:[%s0 + $0x720] sm:$0xff]
      %v590 = vld [vmem:[%s0 + $0x728] sm:$0xff]
      %v591 = vld [vmem:[%s0 + $0x730] sm:$0xff]
      %v592 = vld [vmem:[%s0 + $0x738] sm:$0xff]
      %v593 = vld [vmem:[%s0 + $0x740] sm:$0xff]
      %v594 = vld [vmem:[%s0 + $0x748] sm:$0xff]
      %v595 = vld [vmem:[%s0 + $0x750] sm:$0xff]
      %v596 = vld [vmem:[%s0 + $0x758] sm:$0xff]
      %v597 = vld [vmem:[%s0 + $0x760] sm:$0xff]
      %v598 = vld [vmem:[%s0 + $0x768] sm:$0xff]
      %v599 = vld [vmem:[%s0 + $0x770] sm:$0xff]
      %v600 = vld [vmem:[%s0 + $0x778] sm:$0xff]
      %v601 = vld [vmem:[%s0 + $0x780] sm:$0xff]
      %v602 = vld [vmem:[%s0 + $0x788] sm:$0xff]
      %v603 = vld [vmem:[%s0 + $0x790] sm:$0xff]
      %v604 = vld [vmem:[%s0 + $0x798] sm:$0xff]
      %v605 = vld [vmem:[%s0 + $0x7a0] sm:$0xff]
      %v606 = vld [vmem:[%s0 + $0x7a8] sm:$0xff]
      %v607 = vld [vmem:[%s0 + $0x7b0] sm:$0xff]
      %v608 = vld [vmem:[%s0 + $0x7b8] sm:$0xff]
      %v609 = vld [vmem:[%s0 + $0x7c0] sm:$0xff]
      %v610 = vld [vmem:[%s0 + $0x7c8] sm:$0xff]
      %v611 = vld [vmem:[%s0 + $0x7d0] sm:$0xff]
      %v612 = vld [vmem:[%s0 + $0x7d8] sm:$0xff]
      %v613 = vld [vmem:[%s0 + $0x7e0] sm:$0xff]
      %v614 = vld [vmem:[%s0 + $0x7e8] sm:$0xff]
      %v615 = vld [vmem:[%s0 + $0x7f0] sm:$0xff]
      %v616 = vld [vmem:[%s0 + $0x7f8] sm:$0xff]
      %v617 = vld [vmem:[%s0 + $0x800] sm:$0xff]
      %v618 = vld [vmem:[%s0 + $0x808] sm:$0xff]
      %v619 = vld [vmem:[%s0 + $0x810] sm:$0xff]
      %v620 = vld [vmem:[%s0 + $0x818] sm:$0xff]
      %v621 = vld [vmem:[%s0 + $0x820] sm:$0xff]
      %v622 = vld [vmem:[%s0 + $0x828] sm:$0xff]
      %v623 = vld [vmem:[%s0 + $0x830] sm:$0xff]
      %v624 = vld [vmem:[%s0 + $0x838] sm:$0xff]
      %v625 = vld [vmem:[%s0 + $0x840] sm:$0xff]
      %v626 = vld [vmem:[%s0 + $0x848] sm:$0xff]
      %v627 = vld [vmem:[%s0 + $0x850] sm:$0xff]
      %v628 = vld [vmem:[%s0 + $0x858] sm:$0xff]
      %v629 = vld [vmem:[%s0 + $0x860] sm:$0xff]
      %v630 = vld [vmem:[%s0 + $0x868] sm:$0xff]
      %v631 = vld [vmem:[%s0 + $0x870] sm:$0xff]
      %v632 = vld [vmem:[%s0 + $0x878] sm:$0xff]
      %v633 = vld [vmem:[%s0 + $0x880] sm:$0xff]
      %v634 = vld [vmem:[%s0 + $0x888] sm:$0xff]
      %v635 = vld [vmem:[%s0 + $0x890] sm:$0xff]
      %v636 = vld [vmem:[%s0 + $0x898] sm:$0xff]
      %v637 = vld [vmem:[%s0 + $0x8a0] sm:$0xff]
      %v638 = vld [vmem:[%s0 + $0x8a8] sm:$0xff]
      %v639 = vld [vmem:[%s0 + $0x8b0] sm:$0xff]
      %v640 = vld [vmem:[%s0 + $0x8b8] sm:$0xff]
      %v641 = vld [vmem:[%s0 + $0x8c0] sm:$0xff]
      %v642 = vld [vmem:[%s0 + $0x8c8] sm:$0xff]
      %v643 = vld [vmem:[%s0 + $0x8d0] sm:$0xff]
      %v644 = vld [vmem:[%s0 + $0x8d8] sm:$0xff]
      %v645 = vld [vmem:[%s0 + $0x8e0] sm:$0xff]
      %v646 = vld [vmem:[%s0 + $0x8e8] sm:$0xff]
      %v647 = vld [vmem:[%s0 + $0x8f0] sm:$0xff]
      %v648 = vld [vmem:[%s0 + $0x8f8] sm:$0xff]
      %v649 = vld [vmem:[%s0 + $0x900] sm:$0xff]
      %v650 = vld [vmem:[%s0 + $0x908] sm:$0xff]
      %v651 = vld [vmem:[%s0 + $0x910] sm:$0xff]
      %v652 = vld [vmem:[%s0 + $0x918] sm:$0xff]
      %v653 = vld [vmem:[%s0 + $0x920] sm:$0xff]
      %v654 = vld [vmem:[%s0 + $0x928] sm:$0xff]
      %v655 = vld [vmem:[%s0 + $0x930] sm:$0xff]
      %v656 = vld [vmem:[%s0 + $0x938] sm:$0xff]
      %v657 = vld [vmem:[%s0 + $0x940] sm:$0xff]
      %v658 = vld [vmem:[%s0 + $0x948] sm:$0xff]
      %v659 = vld [vmem:[%s0 + $0x950] sm:$0xff]
      %v660 = vld [vmem:[%s0 + $0x958] sm:$0xff]
      %vm661 = vcmask 392192
      %v663 = vsel %vm661, %v210, 0
      %v666 = vsel %vm661, %v220, 0
      %v669 = vsel %vm661, %v230, 0
      %v672 = vsel %vm661, %v240, 0
      %v675 = vsel %vm661, %v250, 0
      %v678 = vsel %vm661, %v260, 0
      %v681 = vsel %vm661, %v270, 0
      %v684 = vsel %vm661, %v280, 0
      %v687 = vsel %vm661, %v290, 0
      %v690 = vsel %vm661, %v300, 0
      %v693 = vsel %vm661, %v310, 0
      %v696 = vsel %vm661, %v320, 0
      %v699 = vsel %vm661, %v330, 0
      %v702 = vsel %vm661, %v340, 0
      %v705 = vsel %vm661, %v350, 0
      %v708 = vsel %vm661, %v360, 0
      %710 = vmatprep.subr.mxu0 %v362
      %711 = vmatpush1.msra.mxu0 %v361
      %712 = vmatprep.subr.mxu0 %v364
      %713 = vmatpush1.msra.mxu0 %v363
      %714 = vmatprep.subr.mxu0 %v366
      %715 = vmatpush1.msra.mxu0 %v365
      %716 = vmatprep.subr.mxu0 %v368
      %717 = vmatpush1.msra.mxu0 %v367
      %718 = vmatprep.subr.mxu0 %v370
      %719 = vmatpush1.msra.mxu0 %v369
      %720 = vmatprep.subr.mxu0 %v372
      %721 = vmatpush1.msra.mxu0 %v371
      %722 = vmatprep.subr.mxu0 %v374
      %723 = vmatpush1.msra.mxu0 %v373
      %724 = vmatprep.subr.mxu0 %v376
      %725 = vmatpush1.msra.mxu0 %v375
      %726 = vmatprep.subr.mxu0 %v378
      %727 = vmatpush1.msra.mxu0 %v377
      %728 = vmatprep.subr.mxu0 %v380
      %729 = vmatpush1.msra.mxu0 %v379
      %730 = vmatprep.subr.mxu0 %v382
      %731 = vmatpush1.msra.mxu0 %v381
      %732 = vmatprep.subr.mxu0 %v384
      %733 = vmatpush1.msra.mxu0 %v383
      %734 = vmatprep.subr.mxu0 %v386
      %735 = vmatpush1.msra.mxu0 %v385
      %736 = vmatprep.subr.mxu0 %v388
      %737 = vmatpush1.msra.mxu0 %v387
      %738 = vmatprep.subr.mxu0 %v390
      %739 = vmatpush1.msra.mxu0 %v389
      %740 = vmatprep.subr.mxu0 %v392
      %741 = vmatpush1.msra.mxu0 %v391
      %742 = vmatprep.subr.mxu0 %v394
      %743 = vmatpush1.msra.mxu0 %v393
      %744 = vmatprep.subr.mxu0 %v396
      %745 = vmatpush1.msra.mxu0 %v395
      %746 = vmatprep.subr.mxu0 %v398
      %747 = vmatpush1.msra.mxu0 %v397
      %748 = vmatprep.subr.mxu0 %v400
      %749 = vmatpush1.msra.mxu0 %v399
      %750 = vmatprep.subr.mxu0 %v402
      %751 = vmatpush1.msra.mxu0 %v401
      %752 = vmatprep.subr.mxu0 %v404
      %753 = vmatpush1.msra.mxu0 %v403
      %754 = vmatprep.subr.mxu0 %v406
      %755 = vmatpush1.msra.mxu0 %v405
      %756 = vmatprep.subr.mxu0 %v408
      %757 = vmatpush1.msra.mxu0 %v407
      %758 = vmatprep.subr.mxu0 %v410
      %759 = vmatpush1.msra.mxu0 %v409
      %760 = vmatprep.subr.mxu0 %v412
      %761 = vmatpush1.msra.mxu0 %v411
      %762 = vmatprep.subr.mxu0 %v414
      %763 = vmatpush1.msra.mxu0 %v413
      %764 = vmatprep.subr.mxu0 %v416
      %765 = vmatpush1.msra.mxu0 %v415
      %766 = vmatprep.subr.mxu0 %v418
      %767 = vmatpush1.msra.mxu0 %v417
      %768 = vmatprep.subr.mxu0 %v420
      %769 = vmatpush1.msra.mxu0 %v419
      %770 = vmatprep.subr.mxu0 %v422
      %771 = vmatpush1.msra.mxu0 %v421
      %772 = vmatprep.subr.mxu0 %v424
      %773 = vmatpush1.msra.mxu0 %v423
      %774 = vmatprep.mubr.f32.mxu0 %v202
      %775 = vmatmul.mubr.f32.gmra.mrb[0].mxu0 %v201
      %v776 = vpop.f32.mrb[0].mxu0
      %v777 = vadd.f32 0.0, %v776
      %v778 = vpop.f32.mrb[0].mxu0
      %v779 = vadd.f32 0.0, %v778
      %780 = vmatprep.mubr.f32.mxu0 %v212
      %781 = vmatmul.mubr.f32.gmra.mrb[0].mxu0 %v211
      %v782 = vpop.f32.mrb[0].mxu0
      %v783 = vadd.f32 0.0, %v782
      %v784 = vpop.f32.mrb[0].mxu0
      %v785 = vadd.f32 0.0, %v784
      %786 = vmatprep.mubr.f32.mxu0 %v222
      %787 = vmatmul.mubr.f32.gmra.mrb[0].mxu0 %v221
      %v788 = vpop.f32.mrb[0].mxu0
      %v789 = vadd.f32 0.0, %v788
      %v790 = vpop.f32.mrb[0].mxu0
      %v791 = vadd.f32 0.0, %v790
      %792 = vmatprep.mubr.f32.mxu0 %v232
      %793 = vmatmul.mubr.f32.gmra.mrb[0].mxu0 %v231
      %v794 = vpop.f32.mrb[0].mxu0
      %v795 = vadd.f32 0.0, %v794
      %v796 = vpop.f32.mrb[0].mxu0
      %v797 = vadd.f32 0.0, %v796
      %798 = vmatprep.mubr.f32.mxu0 %v242
      %799 = vmatmul.mubr.f32.gmra.mrb[0].mxu0 %v241
      %v800 = vpop.f32.mrb[0].mxu0
      %v801 = vadd.f32 0.0, %v800
      %v802 = vpop.f32.mrb[0].mxu0
      %v803 = vadd.f32 0.0, %v802
      %804 = vmatprep.mubr.f32.mxu0 %v252
      %805 = vmatmul.mubr.f32.gmra.mrb[0].mxu0 %v251
      %v806 = vpop.f32.mrb[0].mxu0
      %v807 = vadd.f32 0.0, %v806
      %v808 = vpop.f32.mrb[0].mxu0
      %v809 = vadd.f32 0.0, %v808
      %810 = vmatprep.mubr.f32.mxu0 %v262
      %811 = vmatmul.mubr.f32.gmra.mrb[0].mxu0 %v261
      %v812 = vpop.f32.mrb[0].mxu0
      %v813 = vadd.f32 0.0, %v812
      %v814 = vpop.f32.mrb[0].mxu0
      %v815 = vadd.f32 0.0, %v814
      %816 = vmatprep.mubr.f32.mxu0 %v272
      %817 = vmatmul.mubr.f32.gmra.mrb[0].mxu0 %v271
      %v818 = vpop.f32.mrb[0].mxu0
      %v819 = vadd.f32 0.0, %v818
      %v820 = vpop.f32.mrb[0].mxu0
      %v821 = vadd.f32 0.0, %v820
      %822 = vmatprep.mubr.f32.mxu0 %v282
      %823 = vmatmul.mubr.f32.gmra.mrb[0].mxu0 %v281
      %v824 = vpop.f32.mrb[0].mxu0
      %v825 = vadd.f32 0.0, %v824
      %v826 = vpop.f32.mrb[0].mxu0
      %v827 = vadd.f32 0.0, %v826
      %828 = vmatprep.mubr.f32.mxu0 %v292
      %829 = vmatmul.mubr.f32.gmra.mrb[0].mxu0 %v291
      %v830 = vpop.f32.mrb[0].mxu0
      %v831 = vadd.f32 0.0, %v830
      %v832 = vpop.f32.mrb[0].mxu0
      %v833 = vadd.f32 0.0, %v832
      %834 = vmatprep.mubr.f32.mxu0 %v302
      %835 = vmatmul.mubr.f32.gmra.mrb[0].mxu0 %v301
      %v836 = vpop.f32.mrb[0].mxu0
      %v837 = vadd.f32 0.0, %v836
      %v838 = vpop.f32.mrb[0].mxu0
      %v839 = vadd.f32 0.0, %v838
      %840 = vmatprep.mubr.f32.mxu0 %v312
      %841 = vmatmul.mubr.f32.gmra.mrb[0].mxu0 %v311
      %v842 = vpop.f32.mrb[0].mxu0
      %v843 = vadd.f32 0.0, %v842
      %v844 = vpop.f32.mrb[0].mxu0
      %v845 = vadd.f32 0.0, %v844
      %846 = vmatprep.mubr.f32.mxu0 %v322
      %847 = vmatmul.mubr.f32.gmra.mrb[0].mxu0 %v321
      %v848 = vpop.f32.mrb[0].mxu0
      %v849 = vadd.f32 0.0, %v848
      %v850 = vpop.f32.mrb[0].mxu0
      %v851 = vadd.f32 0.0, %v850
      %852 = vmatprep.mubr.f32.mxu0 %v332
      %853 = vmatmul.mubr.f32.gmra.mrb[0].mxu0 %v331
      %v854 = vpop.f32.mrb[0].mxu0
      %v855 = vadd.f32 0.0, %v854
      %v856 = vpop.f32.mrb[0].mxu0
      %v857 = vadd.f32 0.0, %v856
      %858 = vmatprep.mubr.f32.mxu0 %v342
      %859 = vmatmul.mubr.f32.gmra.mrb[0].mxu0 %v341
      %v860 = vpop.f32.mrb[0].mxu0
      %v861 = vadd.f32 0.0, %v860
      %v862 = vpop.f32.mrb[0].mxu0
      %v863 = vadd.f32 0.0, %v862
      %864 = vmatprep.mubr.f32.mxu0 %v352
      %865 = vmatmul.mubr.f32.gmra.mrb[0].mxu0 %v351
      %v866 = vpop.f32.mrb[0].mxu0
      %v867 = vadd.f32 0.0, %v866
      %v868 = vpop.f32.mrb[0].mxu0
      %v869 = vadd.f32 0.0, %v868
      %870 = vdwg.mxu0
      %871 = vmatprep.subr.mxu0 %v426
      %872 = vmatpush1.msra.mxu0 %v425
      %873 = vmatprep.subr.mxu0 %v428
      %874 = vmatpush1.msra.mxu0 %v427
      %875 = vmatprep.subr.mxu0 %v430
      %876 = vmatpush1.msra.mxu0 %v429
      %877 = vmatprep.subr.mxu0 %v432
      %878 = vmatpush1.msra.mxu0 %v431
      %879 = vmatprep.subr.mxu0 %v434
      %880 = vmatpush1.msra.mxu0 %v433
      %881 = vmatprep.subr.mxu0 %v436
      %882 = vmatpush1.msra.mxu0 %v435
      %883 = vmatprep.subr.mxu0 %v438
      %884 = vmatpush1.msra.mxu0 %v437
      %885 = vmatprep.subr.mxu0 %v440
      %886 = vmatpush1.msra.mxu0 %v439
      %887 = vmatprep.subr.mxu0 %v442
      %888 = vmatpush1.msra.mxu0 %v441
      %889 = vmatprep.subr.mxu0 %v444
      %890 = vmatpush1.msra.mxu0 %v443
      %891 = vmatprep.subr.mxu0 %v446
      %892 = vmatpush1.msra.mxu0 %v445
      %893 = vmatprep.subr.mxu0 %v448
      %894 = vmatpush1.msra.mxu0 %v447
      %895 = vmatprep.subr.mxu0 %v450
      %896 = vmatpush1.msra.mxu0 %v449
      %897 = vmatprep.subr.mxu0 %v452
      %898 = vmatpush1.msra.mxu0 %v451
      %899 = vmatprep.subr.mxu0 %v454
      %900 = vmatpush1.msra.mxu0 %v453
      %901 = vmatprep.subr.mxu0 %v456
      %902 = vmatpush1.msra.mxu0 %v455
      %903 = vmatprep.subr.mxu0 %v458
      %904 = vmatpush1.msra.mxu0 %v457
      %905 = vmatprep.subr.mxu0 %v460
      %906 = vmatpush1.msra.mxu0 %v459
      %907 = vmatprep.subr.mxu0 %v462
      %908 = vmatpush1.msra.mxu0 %v461
      %909 = vmatprep.subr.mxu0 %v464
      %910 = vmatpush1.msra.mxu0 %v463
      %911 = vmatprep.subr.mxu0 %v466
      %912 = vmatpush1.msra.mxu0 %v465
      %913 = vmatprep.subr.mxu0 %v468
      %914 = vmatpush1.msra.mxu0 %v467
      %915 = vmatprep.subr.mxu0 %v470
      %916 = vmatpush1.msra.mxu0 %v469
      %917 = vmatprep.subr.mxu0 %v472
      %918 = vmatpush1.msra.mxu0 %v471
      %919 = vmatprep.subr.mxu0 %v474
      %920 = vmatpush1.msra.mxu0 %v473
      %921 = vmatprep.subr.mxu0 %v476
      %922 = vmatpush1.msra.mxu0 %v475
      %923 = vmatprep.subr.mxu0 %v478
      %924 = vmatpush1.msra.mxu0 %v477
      %925 = vmatprep.subr.mxu0 %v480
      %926 = vmatpush1.msra.mxu0 %v479
      %927 = vmatprep.subr.mxu0 %v482
      %928 = vmatpush1.msra.mxu0 %v481
      %929 = vmatprep.subr.mxu0 %v484
      %930 = vmatpush1.msra.mxu0 %v483
      %931 = vmatprep.subr.mxu0 %v486
      %932 = vmatpush1.msra.mxu0 %v485
      %933 = vmatprep.subr.mxu0 %v488
      %934 = vmatpush1.msra.mxu0 %v487
      %935 = vmatprep.mubr.f32.mxu0 %v204
      %936 = vmatmul.mubr.f32.gmra.mrb[0].mxu0 %v203
      %v937 = vpop.f32.mrb[0].mxu0
      %v938 = vadd.f32 %v777, %v937
      %v939 = vpop.f32.mrb[0].mxu0
      %v940 = vadd.f32 %v779, %v939
      %941 = vmatprep.mubr.f32.mxu0 %v214
      %942 = vmatmul.mubr.f32.gmra.mrb[0].mxu0 %v213
      %v943 = vpop.f32.mrb[0].mxu0
      %v944 = vadd.f32 %v783, %v943
      %v945 = vpop.f32.mrb[0].mxu0
      %v946 = vadd.f32 %v785, %v945
      %947 = vmatprep.mubr.f32.mxu0 %v224
      %948 = vmatmul.mubr.f32.gmra.mrb[0].mxu0 %v223
      %v949 = vpop.f32.mrb[0].mxu0
      %v950 = vadd.f32 %v789, %v949
      %v951 = vpop.f32.mrb[0].mxu0
      %v952 = vadd.f32 %v791, %v951
      %953 = vmatprep.mubr.f32.mxu0 %v234
      %954 = vmatmul.mubr.f32.gmra.mrb[0].mxu0 %v233
      %v955 = vpop.f32.mrb[0].mxu0
      %v956 = vadd.f32 %v795, %v955
      %v957 = vpop.f32.mrb[0].mxu0
      %v958 = vadd.f32 %v797, %v957
      %959 = vmatprep.mubr.f32.mxu0 %v244
      %960 = vmatmul.mubr.f32.gmra.mrb[0].mxu0 %v243
      %v961 = vpop.f32.mrb[0].mxu0
      %v962 = vadd.f32 %v801, %v961
      %v963 = vpop.f32.mrb[0].mxu0
      %v964 = vadd.f32 %v803, %v963
      %965 = vmatprep.mubr.f32.mxu0 %v254
      %966 = vmatmul.mubr.f32.gmra.mrb[0].mxu0 %v253
      %v967 = vpop.f32.mrb[0].mxu0
      %v968 = vadd.f32 %v807, %v967
      %v969 = vpop.f32.mrb[0].mxu0
      %v970 = vadd.f32 %v809, %v969
      %971 = vmatprep.mubr.f32.mxu0 %v264
      %972 = vmatmul.mubr.f32.gmra.mrb[0].mxu0 %v263
      %v973 = vpop.f32.mrb[0].mxu0
      %v974 = vadd.f32 %v813, %v973
      %v975 = vpop.f32.mrb[0].mxu0
      %v976 = vadd.f32 %v815, %v975
      %977 = vmatprep.mubr.f32.mxu0 %v274
      %978 = vmatmul.mubr.f32.gmra.mrb[0].mxu0 %v273
      %v979 = vpop.f32.mrb[0].mxu0
      %v980 = vadd.f32 %v819, %v979
      %v981 = vpop.f32.mrb[0].mxu0
      %v982 = vadd.f32 %v821, %v981
      %983 = vmatprep.mubr.f32.mxu0 %v284
      %984 = vmatmul.mubr.f32.gmra.mrb[0].mxu0 %v283
      %v985 = vpop.f32.mrb[0].mxu0
      %v986 = vadd.f32 %v825, %v985
      %v987 = vpop.f32.mrb[0].mxu0
      %v988 = vadd.f32 %v827, %v987
      %989 = vmatprep.mubr.f32.mxu0 %v294
      %990 = vmatmul.mubr.f32.gmra.mrb[0].mxu0 %v293
      %v991 = vpop.f32.mrb[0].mxu0
      %v992 = vadd.f32 %v831, %v991
      %v993 = vpop.f32.mrb[0].mxu0
      %v994 = vadd.f32 %v833, %v993
      %995 = vmatprep.mubr.f32.mxu0 %v304
      %996 = vmatmul.mubr.f32.gmra.mrb[0].mxu0 %v303
      %v997 = vpop.f32.mrb[0].mxu0
      %v998 = vadd.f32 %v837, %v997
      %v999 = vpop.f32.mrb[0].mxu0
      %v1000 = vadd.f32 %v839, %v999
      %1001 = vmatprep.mubr.f32.mxu0 %v314
      %1002 = vmatmul.mubr.f32.gmra.mrb[0].mxu0 %v313
      %v1003 = vpop.f32.mrb[0].mxu0
      %v1004 = vadd.f32 %v843, %v1003
      %v1005 = vpop.f32.mrb[0].mxu0
      %v1006 = vadd.f32 %v845, %v1005
      %1007 = vmatprep.mubr.f32.mxu0 %v324
      %1008 = vmatmul.mubr.f32.gmra.mrb[0].mxu0 %v323
      %v1009 = vpop.f32.mrb[0].mxu0
      %v1010 = vadd.f32 %v849, %v1009
      %v1011 = vpop.f32.mrb[0].mxu0
      %v1012 = vadd.f32 %v851, %v1011
      %1013 = vmatprep.mubr.f32.mxu0 %v334
      %1014 = vmatmul.mubr.f32.gmra.mrb[0].mxu0 %v333
      %v1015 = vpop.f32.mrb[0].mxu0
      %v1016 = vadd.f32 %v855, %v1015
      %v1017 = vpop.f32.mrb[0].mxu0
      %v1018 = vadd.f32 %v857, %v1017
      %1019 = vmatprep.mubr.f32.mxu0 %v344
      %1020 = vmatmul.mubr.f32.gmra.mrb[0].mxu0 %v343
      %v1021 = vpop.f32.mrb[0].mxu0
      %v1022 = vadd.f32 %v861, %v1021
      %v1023 = vpop.f32.mrb[0].mxu0
      %v1024 = vadd.f32 %v863, %v1023
      %1025 = vmatprep.mubr.f32.mxu0 %v354
      %1026 = vmatmul.mubr.f32.gmra.mrb[0].mxu0 %v353
      %v1027 = vpop.f32.mrb[0].mxu0
      %v1028 = vadd.f32 %v867, %v1027
      %v1029 = vpop.f32.mrb[0].mxu0
      %v1030 = vadd.f32 %v869, %v1029
      %1031 = vdwg.mxu0
      %1032 = vmatprep.subr.mxu0 %v490
      %1033 = vmatpush1.msra.mxu0 %v489
      %1034 = vmatprep.subr.mxu0 %v492
      %1035 = vmatpush1.msra.mxu0 %v491
      %1036 = vmatprep.subr.mxu0 %v494
      %1037 = vmatpush1.msra.mxu0 %v493
      %1038 = vmatprep.subr.mxu0 %v496
      %1039 = vmatpush1.msra.mxu0 %v495
      %1040 = vmatprep.subr.mxu0 %v498
      %1041 = vmatpush1.msra.mxu0 %v497
      %1042 = vmatprep.subr.mxu0 %v500
      %1043 = vmatpush1.msra.mxu0 %v499
      %1044 = vmatprep.subr.mxu0 %v502
      %1045 = vmatpush1.msra.mxu0 %v501
      %1046 = vmatprep.subr.mxu0 %v504
      %1047 = vmatpush1.msra.mxu0 %v503
      %1048 = vmatprep.subr.mxu0 %v506
      %1049 = vmatpush1.msra.mxu0 %v505
      %1050 = vmatprep.subr.mxu0 %v508
      %1051 = vmatpush1.msra.mxu0 %v507
      %1052 = vmatprep.subr.mxu0 %v510
      %1053 = vmatpush1.msra.mxu0 %v509
      %1054 = vmatprep.subr.mxu0 %v512
      %1055 = vmatpush1.msra.mxu0 %v511
      %1056 = vmatprep.subr.mxu0 %v514
      %1057 = vmatpush1.msra.mxu0 %v513
      %1058 = vmatprep.subr.mxu0 %v516
      %1059 = vmatpush1.msra.mxu0 %v515
      %1060 = vmatprep.subr.mxu0 %v518
      %1061 = vmatpush1.msra.mxu0 %v517
      %1062 = vmatprep.subr.mxu0 %v520
      %1063 = vmatpush1.msra.mxu0 %v519
      %1064 = vmatprep.subr.mxu0 %v522
      %1065 = vmatpush1.msra.mxu0 %v521
      %1066 = vmatprep.subr.mxu0 %v524
      %1067 = vmatpush1.msra.mxu0 %v523
      %1068 = vmatprep.subr.mxu0 %v526
      %1069 = vmatpush1.msra.mxu0 %v525
      %1070 = vmatprep.subr.mxu0 %v528
      %1071 = vmatpush1.msra.mxu0 %v527
      %1072 = vmatprep.subr.mxu0 %v530
      %1073 = vmatpush1.msra.mxu0 %v529
      %1074 = vmatprep.subr.mxu0 %v532
      %1075 = vmatpush1.msra.mxu0 %v531
      %1076 = vmatprep.subr.mxu0 %v534
      %1077 = vmatpush1.msra.mxu0 %v533
      %1078 = vmatprep.subr.mxu0 %v536
      %1079 = vmatpush1.msra.mxu0 %v535
      %1080 = vmatprep.subr.mxu0 %v538
      %1081 = vmatpush1.msra.mxu0 %v537
      %1082 = vmatprep.subr.mxu0 %v540
      %1083 = vmatpush1.msra.mxu0 %v539
      %1084 = vmatprep.subr.mxu0 %v542
      %1085 = vmatpush1.msra.mxu0 %v541
      %1086 = vmatprep.subr.mxu0 %v544
      %1087 = vmatpush1.msra.mxu0 %v543
      %1088 = vmatprep.subr.mxu0 %v546
      %1089 = vmatpush1.msra.mxu0 %v545
      %1090 = vmatprep.subr.mxu0 %v548
      %1091 = vmatpush1.msra.mxu0 %v547
      %1092 = vmatprep.subr.mxu0 %v550
      %1093 = vmatpush1.msra.mxu0 %v549
      %1094 = vmatprep.subr.mxu0 %v552
      %1095 = vmatpush1.msra.mxu0 %v551
      %1096 = vmatprep.mubr.f32.mxu0 %v206
      %1097 = vmatmul.mubr.f32.gmra.mrb[0].mxu0 %v205
      %v1098 = vpop.f32.mrb[0].mxu0
      %v1099 = vadd.f32 %v938, %v1098
      %v1100 = vpop.f32.mrb[0].mxu0
      %v1101 = vadd.f32 %v940, %v1100
      %1102 = vmatprep.mubr.f32.mxu0 %v216
      %1103 = vmatmul.mubr.f32.gmra.mrb[0].mxu0 %v215
      %v1104 = vpop.f32.mrb[0].mxu0
      %v1105 = vadd.f32 %v944, %v1104
      %v1106 = vpop.f32.mrb[0].mxu0
      %v1107 = vadd.f32 %v946, %v1106
      %1108 = vmatprep.mubr.f32.mxu0 %v226
      %1109 = vmatmul.mubr.f32.gmra.mrb[0].mxu0 %v225
      %v1110 = vpop.f32.mrb[0].mxu0
      %v1111 = vadd.f32 %v950, %v1110
      %v1112 = vpop.f32.mrb[0].mxu0
      %v1113 = vadd.f32 %v952, %v1112
      %1114 = vmatprep.mubr.f32.mxu0 %v236
      %1115 = vmatmul.mubr.f32.gmra.mrb[0].mxu0 %v235
      %v1116 = vpop.f32.mrb[0].mxu0
      %v1117 = vadd.f32 %v956, %v1116
      %v1118 = vpop.f32.mrb[0].mxu0
      %v1119 = vadd.f32 %v958, %v1118
      %1120 = vmatprep.mubr.f32.mxu0 %v246
      %1121 = vmatmul.mubr.f32.gmra.mrb[0].mxu0 %v245
      %v1122 = vpop.f32.mrb[0].mxu0
      %v1123 = vadd.f32 %v962, %v1122
      %v1124 = vpop.f32.mrb[0].mxu0
      %v1125 = vadd.f32 %v964, %v1124
      %1126 = vmatprep.mubr.f32.mxu0 %v256
      %1127 = vmatmul.mubr.f32.gmra.mrb[0].mxu0 %v255
      %v1128 = vpop.f32.mrb[0].mxu0
      %v1129 = vadd.f32 %v968, %v1128
      %v1130 = vpop.f32.mrb[0].mxu0
      %v1131 = vadd.f32 %v970, %v1130
      %1132 = vmatprep.mubr.f32.mxu0 %v266
      %1133 = vmatmul.mubr.f32.gmra.mrb[0].mxu0 %v265
      %v1134 = vpop.f32.mrb[0].mxu0
      %v1135 = vadd.f32 %v974, %v1134
      %v1136 = vpop.f32.mrb[0].mxu0
      %v1137 = vadd.f32 %v976, %v1136
      %1138 = vmatprep.mubr.f32.mxu0 %v276
      %1139 = vmatmul.mubr.f32.gmra.mrb[0].mxu0 %v275
      %v1140 = vpop.f32.mrb[0].mxu0
      %v1141 = vadd.f32 %v980, %v1140
      %v1142 = vpop.f32.mrb[0].mxu0
      %v1143 = vadd.f32 %v982, %v1142
      %1144 = vmatprep.mubr.f32.mxu0 %v286
      %1145 = vmatmul.mubr.f32.gmra.mrb[0].mxu0 %v285
      %v1146 = vpop.f32.mrb[0].mxu0
      %v1147 = vadd.f32 %v986, %v1146
      %v1148 = vpop.f32.mrb[0].mxu0
      %v1149 = vadd.f32 %v988, %v1148
      %1150 = vmatprep.mubr.f32.mxu0 %v296
      %1151 = vmatmul.mubr.f32.gmra.mrb[0].mxu0 %v295
      %v1152 = vpop.f32.mrb[0].mxu0
      %v1153 = vadd.f32 %v992, %v1152
      %v1154 = vpop.f32.mrb[0].mxu0
      %v1155 = vadd.f32 %v994, %v1154
      %1156 = vmatprep.mubr.f32.mxu0 %v306
      %1157 = vmatmul.mubr.f32.gmra.mrb[0].mxu0 %v305
      %v1158 = vpop.f32.mrb[0].mxu0
      %v1159 = vadd.f32 %v998, %v1158
      %v1160 = vpop.f32.mrb[0].mxu0
      %v1161 = vadd.f32 %v1000, %v1160
      %1162 = vmatprep.mubr.f32.mxu0 %v316
      %1163 = vmatmul.mubr.f32.gmra.mrb[0].mxu0 %v315
      %v1164 = vpop.f32.mrb[0].mxu0
      %v1165 = vadd.f32 %v1004, %v1164
      %v1166 = vpop.f32.mrb[0].mxu0
      %v1167 = vadd.f32 %v1006, %v1166
      %1168 = vmatprep.mubr.f32.mxu0 %v326
      %1169 = vmatmul.mubr.f32.gmra.mrb[0].mxu0 %v325
      %v1170 = vpop.f32.mrb[0].mxu0
      %v1171 = vadd.f32 %v1010, %v1170
      %v1172 = vpop.f32.mrb[0].mxu0
      %v1173 = vadd.f32 %v1012, %v1172
      %1174 = vmatprep.mubr.f32.mxu0 %v336
      %1175 = vmatmul.mubr.f32.gmra.mrb[0].mxu0 %v335
      %v1176 = vpop.f32.mrb[0].mxu0
      %v1177 = vadd.f32 %v1016, %v1176
      %v1178 = vpop.f32.mrb[0].mxu0
      %v1179 = vadd.f32 %v1018, %v1178
      %1180 = vmatprep.mubr.f32.mxu0 %v346
      %1181 = vmatmul.mubr.f32.gmra.mrb[0].mxu0 %v345
      %v1182 = vpop.f32.mrb[0].mxu0
      %v1183 = vadd.f32 %v1022, %v1182
      %v1184 = vpop.f32.mrb[0].mxu0
      %v1185 = vadd.f32 %v1024, %v1184
      %1186 = vmatprep.mubr.f32.mxu0 %v356
      %1187 = vmatmul.mubr.f32.gmra.mrb[0].mxu0 %v355
      %v1188 = vpop.f32.mrb[0].mxu0
      %v1189 = vadd.f32 %v1028, %v1188
      %v1190 = vpop.f32.mrb[0].mxu0
      %v1191 = vadd.f32 %v1030, %v1190
      %1192 = vdwg.mxu0
      %1193 = vmatprep.subr.mxu0 %v554
      %1194 = vmatpush1.msra.mxu0 %v553
      %1195 = vmatprep.subr.mxu0 %v556
      %1196 = vmatpush1.msra.mxu0 %v555
      %1197 = vmatprep.subr.mxu0 %v558
      %1198 = vmatpush1.msra.mxu0 %v557
      %1199 = vmatprep.subr.mxu0 %v560
      %1200 = vmatpush1.msra.mxu0 %v559
      %1201 = vmatprep.subr.mxu0 %v562
      %1202 = vmatpush1.msra.mxu0 %v561
      %1203 = vmatprep.subr.mxu0 %v564
      %1204 = vmatpush1.msra.mxu0 %v563
      %1205 = vmatprep.subr.mxu0 %v566
      %1206 = vmatpush1.msra.mxu0 %v565
      %1207 = vmatprep.subr.mxu0 %v568
      %1208 = vmatpush1.msra.mxu0 %v567
      %1209 = vmatprep.subr.mxu0 %v570
      %1210 = vmatpush1.msra.mxu0 %v569
      %1211 = vmatprep.subr.mxu0 %v572
      %1212 = vmatpush1.msra.mxu0 %v571
      %1213 = vmatprep.subr.mxu0 %v574
      %1214 = vmatpush1.msra.mxu0 %v573
      %1215 = vmatprep.subr.mxu0 %v576
      %1216 = vmatpush1.msra.mxu0 %v575
      %1217 = vmatprep.subr.mxu0 %v578
      %1218 = vmatpush1.msra.mxu0 %v577
      %1219 = vmatprep.subr.mxu0 %v580
      %1220 = vmatpush1.msra.mxu0 %v579
      %1221 = vmatprep.subr.mxu0 %v582
      %1222 = vmatpush1.msra.mxu0 %v581
      %1223 = vmatprep.subr.mxu0 %v584
      %1224 = vmatpush1.msra.mxu0 %v583
      %1225 = vmatprep.subr.mxu0 %v586
      %1226 = vmatpush1.msra.mxu0 %v585
      %1227 = vmatprep.subr.mxu0 %v588
      %1228 = vmatpush1.msra.mxu0 %v587
      %1229 = vmatprep.subr.mxu0 %v590
      %1230 = vmatpush1.msra.mxu0 %v589
      %1231 = vmatprep.subr.mxu0 %v592
      %1232 = vmatpush1.msra.mxu0 %v591
      %1233 = vmatprep.subr.mxu0 %v594
      %1234 = vmatpush1.msra.mxu0 %v593
      %1235 = vmatprep.subr.mxu0 %v596
      %1236 = vmatpush1.msra.mxu0 %v595
      %1237 = vmatprep.subr.mxu0 %v598
      %1238 = vmatpush1.msra.mxu0 %v597
      %1239 = vmatprep.subr.mxu0 %v600
      %1240 = vmatpush1.msra.mxu0 %v599
      %1241 = vmatprep.subr.mxu0 %v602
      %1242 = vmatpush1.msra.mxu0 %v601
      %1243 = vmatprep.subr.mxu0 %v604
      %1244 = vmatpush1.msra.mxu0 %v603
      %1245 = vmatprep.subr.mxu0 %v606
      %1246 = vmatpush1.msra.mxu0 %v605
      %1247 = vmatprep.subr.mxu0 %v608
      %1248 = vmatpush1.msra.mxu0 %v607
      %1249 = vmatprep.subr.mxu0 %v610
      %1250 = vmatpush1.msra.mxu0 %v609
      %1251 = vmatprep.subr.mxu0 %v612
      %1252 = vmatpush1.msra.mxu0 %v611
      %1253 = vmatprep.subr.mxu0 %v614
      %1254 = vmatpush1.msra.mxu0 %v613
      %1255 = vmatprep.subr.mxu0 %v616
      %1256 = vmatpush1.msra.mxu0 %v615
      %1257 = vmatprep.mubr.f32.mxu0 %v208
      %1258 = vmatmul.mubr.f32.gmra.mrb[0].mxu0 %v207
      %v1259 = vpop.f32.mrb[0].mxu0
      %v1260 = vadd.f32 %v1099, %v1259
      %v1261 = vpop.f32.mrb[0].mxu0
      %v1262 = vadd.f32 %v1101, %v1261
      %1263 = vmatprep.mubr.f32.mxu0 %v218
      %1264 = vmatmul.mubr.f32.gmra.mrb[0].mxu0 %v217
      %v1265 = vpop.f32.mrb[0].mxu0
      %v1266 = vadd.f32 %v1105, %v1265
      %v1267 = vpop.f32.mrb[0].mxu0
      %v1268 = vadd.f32 %v1107, %v1267
      %1269 = vmatprep.mubr.f32.mxu0 %v228
      %1270 = vmatmul.mubr.f32.gmra.mrb[0].mxu0 %v227
      %v1271 = vpop.f32.mrb[0].mxu0
      %v1272 = vadd.f32 %v1111, %v1271
      %v1273 = vpop.f32.mrb[0].mxu0
      %v1274 = vadd.f32 %v1113, %v1273
      %1275 = vmatprep.mubr.f32.mxu0 %v238
      %1276 = vmatmul.mubr.f32.gmra.mrb[0].mxu0 %v237
      %v1277 = vpop.f32.mrb[0].mxu0
      %v1278 = vadd.f32 %v1117, %v1277
      %v1279 = vpop.f32.mrb[0].mxu0
      %v1280 = vadd.f32 %v1119, %v1279
      %1281 = vmatprep.mubr.f32.mxu0 %v248
      %1282 = vmatmul.mubr.f32.gmra.mrb[0].mxu0 %v247
      %v1283 = vpop.f32.mrb[0].mxu0
      %v1284 = vadd.f32 %v1123, %v1283
      %v1285 = vpop.f32.mrb[0].mxu0
      %v1286 = vadd.f32 %v1125, %v1285
      %1287 = vmatprep.mubr.f32.mxu0 %v258
      %1288 = vmatmul.mubr.f32.gmra.mrb[0].mxu0 %v257
      %v1289 = vpop.f32.mrb[0].mxu0
      %v1290 = vadd.f32 %v1129, %v1289
      %v1291 = vpop.f32.mrb[0].mxu0
      %v1292 = vadd.f32 %v1131, %v1291
      %1293 = vmatprep.mubr.f32.mxu0 %v268
      %1294 = vmatmul.mubr.f32.gmra.mrb[0].mxu0 %v267
      %v1295 = vpop.f32.mrb[0].mxu0
      %v1296 = vadd.f32 %v1135, %v1295
      %v1297 = vpop.f32.mrb[0].mxu0
      %v1298 = vadd.f32 %v1137, %v1297
      %1299 = vmatprep.mubr.f32.mxu0 %v278
      %1300 = vmatmul.mubr.f32.gmra.mrb[0].mxu0 %v277
      %v1301 = vpop.f32.mrb[0].mxu0
      %v1302 = vadd.f32 %v1141, %v1301
      %v1303 = vpop.f32.mrb[0].mxu0
      %v1304 = vadd.f32 %v1143, %v1303
      %1305 = vmatprep.mubr.f32.mxu0 %v288
      %1306 = vmatmul.mubr.f32.gmra.mrb[0].mxu0 %v287
      %v1307 = vpop.f32.mrb[0].mxu0
      %v1308 = vadd.f32 %v1147, %v1307
      %v1309 = vpop.f32.mrb[0].mxu0
      %v1310 = vadd.f32 %v1149, %v1309
      %1311 = vmatprep.mubr.f32.mxu0 %v298
      %1312 = vmatmul.mubr.f32.gmra.mrb[0].mxu0 %v297
      %v1313 = vpop.f32.mrb[0].mxu0
      %v1314 = vadd.f32 %v1153, %v1313
      %v1315 = vpop.f32.mrb[0].mxu0
      %v1316 = vadd.f32 %v1155, %v1315
      %1317 = vmatprep.mubr.f32.mxu0 %v308
      %1318 = vmatmul.mubr.f32.gmra.mrb[0].mxu0 %v307
      %v1319 = vpop.f32.mrb[0].mxu0
      %v1320 = vadd.f32 %v1159, %v1319
      %v1321 = vpop.f32.mrb[0].mxu0
      %v1322 = vadd.f32 %v1161, %v1321
      %1323 = vmatprep.mubr.f32.mxu0 %v318
      %1324 = vmatmul.mubr.f32.gmra.mrb[0].mxu0 %v317
      %v1325 = vpop.f32.mrb[0].mxu0
      %v1326 = vadd.f32 %v1165, %v1325
      %v1327 = vpop.f32.mrb[0].mxu0
      %v1328 = vadd.f32 %v1167, %v1327
      %1329 = vmatprep.mubr.f32.mxu0 %v328
      %1330 = vmatmul.mubr.f32.gmra.mrb[0].mxu0 %v327
      %v1331 = vpop.f32.mrb[0].mxu0
      %v1332 = vadd.f32 %v1171, %v1331
      %v1333 = vpop.f32.mrb[0].mxu0
      %v1334 = vadd.f32 %v1173, %v1333
      %1335 = vmatprep.mubr.f32.mxu0 %v338
      %1336 = vmatmul.mubr.f32.gmra.mrb[0].mxu0 %v337
      %v1337 = vpop.f32.mrb[0].mxu0
      %v1338 = vadd.f32 %v1177, %v1337
      %v1339 = vpop.f32.mrb[0].mxu0
      %v1340 = vadd.f32 %v1179, %v1339
      %1341 = vmatprep.mubr.f32.mxu0 %v348
      %1342 = vmatmul.mubr.f32.gmra.mrb[0].mxu0 %v347
      %v1343 = vpop.f32.mrb[0].mxu0
      %v1344 = vadd.f32 %v1183, %v1343
      %v1345 = vpop.f32.mrb[0].mxu0
      %v1346 = vadd.f32 %v1185, %v1345
      %1347 = vmatprep.mubr.f32.mxu0 %v358
      %1348 = vmatmul.mubr.f32.gmra.mrb[0].mxu0 %v357
      %v1349 = vpop.f32.mrb[0].mxu0
      %v1350 = vadd.f32 %v1189, %v1349
      %v1351 = vpop.f32.mrb[0].mxu0
      %v1352 = vadd.f32 %v1191, %v1351
      %1353 = vdwg.mxu0
      %1354 = vmatprep.subr.mxu0 %v618
      %1355 = vmatpush1.msra.mxu0 %v617
      %1356 = vmatprep.subr.mxu0 %v620
      %1357 = vmatpush1.msra.mxu0 %v619
      %1358 = vmatprep.subr.mxu0 %v622
      %1359 = vmatpush1.msra.mxu0 %v621
      %1360 = vmatprep.subr.mxu0 %v624
      %1361 = vmatpush1.msra.mxu0 %v623
      %1362 = vmatprep.subr.mxu0 %v626
      %1363 = vmatpush1.msra.mxu0 %v625
      %1364 = vmatprep.subr.mxu0 %v628
      %1365 = vmatpush1.msra.mxu0 %v627
      %1366 = vmatprep.subr.mxu0 %v630
      %1367 = vmatpush1.msra.mxu0 %v629
      %1368 = vmatprep.subr.mxu0 %v632
      %1369 = vmatpush1.msra.mxu0 %v631
      %1370 = vmatprep.subr.mxu0 %v634
      %1371 = vmatpush1.msra.mxu0 %v633
      %1372 = vmatprep.subr.mxu0 %v636
      %1373 = vmatpush1.msra.mxu0 %v635
      %1374 = vmatprep.subr.mxu0 %v638
      %1375 = vmatpush1.msra.mxu0 %v637
      %1376 = vmatprep.subr.mxu0 %v640
      %1377 = vmatpush1.msra.mxu0 %v639
      %1378 = vmatprep.subr.mxu0 %v642
      %1379 = vmatpush1.msra.mxu0 %v641
      %1380 = vmatprep.subr.mxu0 %v644
      %1381 = vmatpush1.msra.mxu0 %v643
      %1382 = vmatprep.subr.mxu0 %v646
      %1383 = vmatpush1.msra.mxu0 %v645
      %1384 = vmatprep.subr.mxu0 %v648
      %1385 = vmatpush1.msra.mxu0 %v647
      %1386 = vmatprep.subr.mxu0 %v650
      %1387 = vmatpush1.msra.mxu0 %v649
      %1388 = vmatprep.subr.mxu0 %v652
      %1389 = vmatpush1.msra.mxu0 %v651
      %1390 = vmatprep.subr.mxu0 %v654
      %1391 = vmatpush1.msra.mxu0 %v653
      %1392 = vmatprep.subr.mxu0 %v656
      %1393 = vmatpush1.msra.mxu0 %v655
      %1394 = vmatprep.subr.mxu0 %v658
      %1395 = vmatpush1.msra.mxu0 %v657
      %1396 = vmatprep.subr.mxu0 %v660
      %1397 = vmatpush1.msra.mxu0 %v659
      %1398 = vmatprep.subr.mxu0 0.0
      %1399 = vmatpush1.msra.mxu0 0.0
      %1400 = vmatprep.subr.mxu0 0.0
      %1401 = vmatpush1.msra.mxu0 0.0
      %1402 = vmatprep.subr.mxu0 0.0
      %1403 = vmatpush1.msra.mxu0 0.0
      %1404 = vmatprep.subr.mxu0 0.0
      %1405 = vmatpush1.msra.mxu0 0.0
      %1406 = vmatprep.subr.mxu0 0.0
      %1407 = vmatpush1.msra.mxu0 0.0
      %1408 = vmatprep.subr.mxu0 0.0
      %1409 = vmatpush1.msra.mxu0 0.0
      %1410 = vmatprep.subr.mxu0 0.0
      %1411 = vmatpush1.msra.mxu0 0.0
      %1412 = vmatprep.subr.mxu0 0.0
      %1413 = vmatpush1.msra.mxu0 0.0
      %1414 = vmatprep.subr.mxu0 0.0
      %1415 = vmatpush1.msra.mxu0 0.0
      %1416 = vmatprep.subr.mxu0 0.0
      %1417 = vmatpush1.msra.mxu0 0.0
      %1418 = vmatprep.mubr.f32.mxu0 %v663
      %1419 = vmatmul.mubr.f32.gmra.mrb[0].mxu0 %v209
      %v1420 = vpop.f32.mrb[0].mxu0
      %v1421 = vadd.f32 %v1260, %v1420
      %v1422 = vpop.f32.mrb[0].mxu0
      %v1423 = vadd.f32 %v1262, %v1422
      %1424 = vmatprep.mubr.f32.mxu0 %v666
      %1425 = vmatmul.mubr.f32.gmra.mrb[0].mxu0 %v219
      %v1426 = vpop.f32.mrb[0].mxu0
      %v1427 = vadd.f32 %v1266, %v1426
      %v1428 = vpop.f32.mrb[0].mxu0
      %v1429 = vadd.f32 %v1268, %v1428
      %1430 = vmatprep.mubr.f32.mxu0 %v669
      %1431 = vmatmul.mubr.f32.gmra.mrb[0].mxu0 %v229
      %v1432 = vpop.f32.mrb[0].mxu0
      %v1433 = vadd.f32 %v1272, %v1432
      %v1434 = vpop.f32.mrb[0].mxu0
      %v1435 = vadd.f32 %v1274, %v1434
      %1436 = vmatprep.mubr.f32.mxu0 %v672
      %1437 = vmatmul.mubr.f32.gmra.mrb[0].mxu0 %v239
      %v1438 = vpop.f32.mrb[0].mxu0
      %v1439 = vadd.f32 %v1278, %v1438
      %v1440 = vpop.f32.mrb[0].mxu0
      %v1441 = vadd.f32 %v1280, %v1440
      %1442 = vmatprep.mubr.f32.mxu0 %v675
      %1443 = vmatmul.mubr.f32.gmra.mrb[0].mxu0 %v249
      %v1444 = vpop.f32.mrb[0].mxu0
      %v1445 = vadd.f32 %v1284, %v1444
      %v1446 = vpop.f32.mrb[0].mxu0
      %v1447 = vadd.f32 %v1286, %v1446
      %1448 = vmatprep.mubr.f32.mxu0 %v678
      %1449 = vmatmul.mubr.f32.gmra.mrb[0].mxu0 %v259
      %v1450 = vpop.f32.mrb[0].mxu0
      %v1451 = vadd.f32 %v1290, %v1450
      %v1452 = vpop.f32.mrb[0].mxu0
      %v1453 = vadd.f32 %v1292, %v1452
      %1454 = vmatprep.mubr.f32.mxu0 %v681
      %1455 = vmatmul.mubr.f32.gmra.mrb[0].mxu0 %v269
      %v1456 = vpop.f32.mrb[0].mxu0
      %v1457 = vadd.f32 %v1296, %v1456
      %v1458 = vpop.f32.mrb[0].mxu0
      %v1459 = vadd.f32 %v1298, %v1458
      %1460 = vmatprep.mubr.f32.mxu0 %v684
      %1461 = vmatmul.mubr.f32.gmra.mrb[0].mxu0 %v279
      %v1462 = vpop.f32.mrb[0].mxu0
      %v1463 = vadd.f32 %v1302, %v1462
      %v1464 = vpop.f32.mrb[0].mxu0
      %v1465 = vadd.f32 %v1304, %v1464
      %1466 = vmatprep.mubr.f32.mxu0 %v687
      %1467 = vmatmul.mubr.f32.gmra.mrb[0].mxu0 %v289
      %v1468 = vpop.f32.mrb[0].mxu0
      %v1469 = vadd.f32 %v1308, %v1468
      %v1470 = vpop.f32.mrb[0].mxu0
      %v1471 = vadd.f32 %v1310, %v1470
      %1472 = vmatprep.mubr.f32.mxu0 %v690
      %1473 = vmatmul.mubr.f32.gmra.mrb[0].mxu0 %v299
      %v1474 = vpop.f32.mrb[0].mxu0
      %v1475 = vadd.f32 %v1314, %v1474
      %v1476 = vpop.f32.mrb[0].mxu0
      %v1477 = vadd.f32 %v1316, %v1476
      %1478 = vmatprep.mubr.f32.mxu0 %v693
      %1479 = vmatmul.mubr.f32.gmra.mrb[0].mxu0 %v309
      %v1480 = vpop.f32.mrb[0].mxu0
      %v1481 = vadd.f32 %v1320, %v1480
      %v1482 = vpop.f32.mrb[0].mxu0
      %v1483 = vadd.f32 %v1322, %v1482
      %1484 = vmatprep.mubr.f32.mxu0 %v696
      %1485 = vmatmul.mubr.f32.gmra.mrb[0].mxu0 %v319
      %v1486 = vpop.f32.mrb[0].mxu0
      %v1487 = vadd.f32 %v1326, %v1486
      %v1488 = vpop.f32.mrb[0].mxu0
      %v1489 = vadd.f32 %v1328, %v1488
      %1490 = vmatprep.mubr.f32.mxu0 %v699
      %1491 = vmatmul.mubr.f32.gmra.mrb[0].mxu0 %v329
      %v1492 = vpop.f32.mrb[0].mxu0
      %v1493 = vadd.f32 %v1332, %v1492
      %v1494 = vpop.f32.mrb[0].mxu0
      %v1495 = vadd.f32 %v1334, %v1494
      %1496 = vmatprep.mubr.f32.mxu0 %v702
      %1497 = vmatmul.mubr.f32.gmra.mrb[0].mxu0 %v339
      %v1498 = vpop.f32.mrb[0].mxu0
      %v1499 = vadd.f32 %v1338, %v1498
      %v1500 = vpop.f32.mrb[0].mxu0
      %v1501 = vadd.f32 %v1340, %v1500
      %1502 = vmatprep.mubr.f32.mxu0 %v705
      %1503 = vmatmul.mubr.f32.gmra.mrb[0].mxu0 %v349
      %v1504 = vpop.f32.mrb[0].mxu0
      %v1505 = vadd.f32 %v1344, %v1504
      %v1506 = vpop.f32.mrb[0].mxu0
      %v1507 = vadd.f32 %v1346, %v1506
      %1508 = vmatprep.mubr.f32.mxu0 %v708
      %1509 = vmatmul.mubr.f32.gmra.mrb[0].mxu0 %v359
      %v1510 = vpop.f32.mrb[0].mxu0
      %v1511 = vadd.f32 %v1350, %v1510
      %v1512 = vpop.f32.mrb[0].mxu0
      %v1513 = vadd.f32 %v1352, %v1512
      %1514 = vdwg.mxu0
      %vm1515 = vcmask 556032
      %v1516 = vsel %vm1515, %v1423, 0.0
      %v1517 = vadd.f32 %v1421, %v1516
      %1518 = vadd.xlane.f32.xlu0 %v1517
      %v1519 = vpop.xlane.xlu0 %1518
      %v1520 = vsel %vm1515, %v1429, 0.0
      %v1521 = vadd.f32 %v1427, %v1520
      %1522 = vadd.xlane.f32.xlu0 %v1521
      %v1523 = vpop.xlane.xlu0 %1522
      %v1524 = vsel %vm1515, %v1435, 0.0
      %v1525 = vadd.f32 %v1433, %v1524
      %1526 = vadd.xlane.f32.xlu0 %v1525
      %v1527 = vpop.xlane.xlu0 %1526
      %v1528 = vsel %vm1515, %v1441, 0.0
      %v1529 = vadd.f32 %v1439, %v1528
      %1530 = vadd.xlane.f32.xlu0 %v1529
      %v1531 = vpop.xlane.xlu0 %1530
      %v1532 = vsel %vm1515, %v1447, 0.0
      %v1533 = vadd.f32 %v1445, %v1532
      %1534 = vadd.xlane.f32.xlu0 %v1533
      %v1535 = vpop.xlane.xlu0 %1534
      %v1536 = vsel %vm1515, %v1453, 0.0
      %v1537 = vadd.f32 %v1451, %v1536
      %1538 = vadd.xlane.f32.xlu0 %v1537
      %v1539 = vpop.xlane.xlu0 %1538
      %v1540 = vsel %vm1515, %v1459, 0.0
      %v1541 = vadd.f32 %v1457, %v1540
      %1542 = vadd.xlane.f32.xlu0 %v1541
      %v1543 = vpop.xlane.xlu0 %1542
      %v1544 = vsel %vm1515, %v1465, 0.0
      %v1545 = vadd.f32 %v1463, %v1544
      %1546 = vadd.xlane.f32.xlu0 %v1545
      %v1547 = vpop.xlane.xlu0 %1546
      %v1548 = vsel %vm1515, %v1471, 0.0
      %v1549 = vadd.f32 %v1469, %v1548
      %1550 = vadd.xlane.f32.xlu0 %v1549
      %v1551 = vpop.xlane.xlu0 %1550
      %v1552 = vsel %vm1515, %v1477, 0.0
      %v1553 = vadd.f32 %v1475, %v1552
      %1554 = vadd.xlane.f32.xlu0 %v1553
      %v1555 = vpop.xlane.xlu0 %1554
      %v1556 = vsel %vm1515, %v1483, 0.0
      %v1557 = vadd.f32 %v1481, %v1556
      %1558 = vadd.xlane.f32.xlu0 %v1557
      %v1559 = vpop.xlane.xlu0 %1558
      %v1560 = vsel %vm1515, %v1489, 0.0
      %v1561 = vadd.f32 %v1487, %v1560
      %1562 = vadd.xlane.f32.xlu0 %v1561
      %v1563 = vpop.xlane.xlu0 %1562
      %v1564 = vsel %vm1515, %v1495, 0.0
      %v1565 = vadd.f32 %v1493, %v1564
      %1566 = vadd.xlane.f32.xlu0 %v1565
      %v1567 = vpop.xlane.xlu0 %1566
      %v1568 = vsel %vm1515, %v1501, 0.0
      %v1569 = vadd.f32 %v1499, %v1568
      %1570 = vadd.xlane.f32.xlu0 %v1569
      %v1571 = vpop.xlane.xlu0 %1570
      %v1572 = vsel %vm1515, %v1507, 0.0
      %v1573 = vadd.f32 %v1505, %v1572
      %1574 = vadd.xlane.f32.xlu0 %v1573
      %v1575 = vpop.xlane.xlu0 %1574
      %v1576 = vsel %vm1515, %v1513, 0.0
      %v1577 = vadd.f32 %v1511, %v1576
      %1578 = vadd.xlane.f32.xlu0 %v1577
      %v1579 = vpop.xlane.xlu0 %1578
      %v1580 = vmul.f32 %v1519, 0.0051020407
      %v1581 = vmul.f32 %v1523, 0.0051020407
      %v1582 = vmul.f32 %v1527, 0.0051020407
      %v1583 = vmul.f32 %v1531, 0.0051020407
      %v1584 = vmul.f32 %v1535, 0.0051020407
      %v1585 = vmul.f32 %v1539, 0.0051020407
      %v1586 = vmul.f32 %v1543, 0.0051020407
      %v1587 = vmul.f32 %v1547, 0.0051020407
      %v1588 = vmul.f32 %v1551, 0.0051020407
      %v1589 = vmul.f32 %v1555, 0.0051020407
      %v1590 = vmul.f32 %v1559, 0.0051020407
      %v1591 = vmul.f32 %v1563, 0.0051020407
      %v1592 = vmul.f32 %v1567, 0.0051020407
      %v1593 = vmul.f32 %v1571, 0.0051020407
      %v1594 = vmul.f32 %v1575, 0.0051020407
      %v1595 = vmul.f32 %v1579, 0.0051020407
      %v1596 = vmul.f32 %v1421, %v1421
      %v1597 = vmul.f32 %v1423, %v1423
      %v1598 = vmul.f32 %v1427, %v1427
      %v1599 = vmul.f32 %v1429, %v1429
      %v1600 = vmul.f32 %v1433, %v1433
      %v1601 = vmul.f32 %v1435, %v1435
      %v1602 = vmul.f32 %v1439, %v1439
      %v1603 = vmul.f32 %v1441, %v1441
      %v1604 = vmul.f32 %v1445, %v1445
      %v1605 = vmul.f32 %v1447, %v1447
      %v1606 = vmul.f32 %v1451, %v1451
      %v1607 = vmul.f32 %v1453, %v1453
      %v1608 = vmul.f32 %v1457, %v1457
      %v1609 = vmul.f32 %v1459, %v1459
      %v1610 = vmul.f32 %v1463, %v1463
      %v1611 = vmul.f32 %v1465, %v1465
      %v1612 = vmul.f32 %v1469, %v1469
      %v1613 = vmul.f32 %v1471, %v1471
      %v1614 = vmul.f32 %v1475, %v1475
      %v1615 = vmul.f32 %v1477, %v1477
      %v1616 = vmul.f32 %v1481, %v1481
      %v1617 = vmul.f32 %v1483, %v1483
      %v1618 = vmul.f32 %v1487, %v1487
      %v1619 = vmul.f32 %v1489, %v1489
      %v1620 = vmul.f32 %v1493, %v1493
      %v1621 = vmul.f32 %v1495, %v1495
      %v1622 = vmul.f32 %v1499, %v1499
      %v1623 = vmul.f32 %v1501, %v1501
      %v1624 = vmul.f32 %v1505, %v1505
      %v1625 = vmul.f32 %v1507, %v1507
      %v1626 = vmul.f32 %v1511, %v1511
      %v1627 = vmul.f32 %v1513, %v1513
      %v1628 = vsel %vm1515, %v1597, 0.0
      %v1629 = vadd.f32 %v1596, %v1628
      %1630 = vadd.xlane.f32.xlu0 %v1629
      %v1631 = vpop.xlane.xlu0 %1630
      %v1632 = vsel %vm1515, %v1599, 0.0
      %v1633 = vadd.f32 %v1598, %v1632
      %1634 = vadd.xlane.f32.xlu0 %v1633
      %v1635 = vpop.xlane.xlu0 %1634
      %v1636 = vsel %vm1515, %v1601, 0.0
      %v1637 = vadd.f32 %v1600, %v1636
      %1638 = vadd.xlane.f32.xlu0 %v1637
      %v1639 = vpop.xlane.xlu0 %1638
      %v1640 = vsel %vm1515, %v1603, 0.0
      %v1641 = vadd.f32 %v1602, %v1640
      %1642 = vadd.xlane.f32.xlu0 %v1641
      %v1643 = vpop.xlane.xlu0 %1642
      %v1644 = vsel %vm1515, %v1605, 0.0
      %v1645 = vadd.f32 %v1604, %v1644
      %1646 = vadd.xlane.f32.xlu0 %v1645
      %v1647 = vpop.xlane.xlu0 %1646
      %v1648 = vsel %vm1515, %v1607, 0.0
      %v1649 = vadd.f32 %v1606, %v1648
      %1650 = vadd.xlane.f32.xlu0 %v1649
      %v1651 = vpop.xlane.xlu0 %1650
      %v1652 = vsel %vm1515, %v1609, 0.0
      %v1653 = vadd.f32 %v1608, %v1652
      %1654 = vadd.xlane.f32.xlu0 %v1653
      %v1655 = vpop.xlane.xlu0 %1654
      %v1656 = vsel %vm1515, %v1611, 0.0
      %v1657 = vadd.f32 %v1610, %v1656
      %1658 = vadd.xlane.f32.xlu0 %v1657
      %v1659 = vpop.xlane.xlu0 %1658
      %v1660 = vsel %vm1515, %v1613, 0.0
      %v1661 = vadd.f32 %v1612, %v1660
      %1662 = vadd.xlane.f32.xlu0 %v1661
      %v1663 = vpop.xlane.xlu0 %1662
      %v1664 = vsel %vm1515, %v1615, 0.0
      %v1665 = vadd.f32 %v1614, %v1664
      %1666 = vadd.xlane.f32.xlu0 %v1665
      %v1667 = vpop.xlane.xlu0 %1666
      %v1668 = vsel %vm1515, %v1617, 0.0
      %v1669 = vadd.f32 %v1616, %v1668
      %1670 = vadd.xlane.f32.xlu0 %v1669
      %v1671 = vpop.xlane.xlu0 %1670
      %v1672 = vsel %vm1515, %v1619, 0.0
      %v1673 = vadd.f32 %v1618, %v1672
      %1674 = vadd.xlane.f32.xlu0 %v1673
      %v1675 = vpop.xlane.xlu0 %1674
      %v1676 = vsel %vm1515, %v1621, 0.0
      %v1677 = vadd.f32 %v1620, %v1676
      %1678 = vadd.xlane.f32.xlu0 %v1677
      %v1679 = vpop.xlane.xlu0 %1678
      %v1680 = vsel %vm1515, %v1623, 0.0
      %v1681 = vadd.f32 %v1622, %v1680
      %1682 = vadd.xlane.f32.xlu0 %v1681
      %v1683 = vpop.xlane.xlu0 %1682
      %v1684 = vsel %vm1515, %v1625, 0.0
      %v1685 = vadd.f32 %v1624, %v1684
      %1686 = vadd.xlane.f32.xlu0 %v1685
      %v1687 = vpop.xlane.xlu0 %1686
      %v1688 = vsel %vm1515, %v1627, 0.0
      %v1689 = vadd.f32 %v1626, %v1688
      %1690 = vadd.xlane.f32.xlu0 %v1689
      %v1691 = vpop.xlane.xlu0 %1690
      %v1692 = vmul.f32 %v1631, 0.0051020407
      %v1693 = vmul.f32 %v1635, 0.0051020407
      %v1694 = vmul.f32 %v1639, 0.0051020407
      %v1695 = vmul.f32 %v1643, 0.0051020407
      %v1696 = vmul.f32 %v1647, 0.0051020407
      %v1697 = vmul.f32 %v1651, 0.0051020407
      %v1698 = vmul.f32 %v1655, 0.0051020407
      %v1699 = vmul.f32 %v1659, 0.0051020407
      %v1700 = vmul.f32 %v1663, 0.0051020407
      %v1701 = vmul.f32 %v1667, 0.0051020407
      %v1702 = vmul.f32 %v1671, 0.0051020407
      %v1703 = vmul.f32 %v1675, 0.0051020407
      %v1704 = vmul.f32 %v1679, 0.0051020407
      %v1705 = vmul.f32 %v1683, 0.0051020407
      %v1706 = vmul.f32 %v1687, 0.0051020407
      %v1707 = vmul.f32 %v1691, 0.0051020407
      %v1708 = vmul.f32 %v1580, %v1580
      %v1709 = vmul.f32 %v1581, %v1581
      %v1710 = vmul.f32 %v1582, %v1582
      %v1711 = vmul.f32 %v1583, %v1583
      %v1712 = vmul.f32 %v1584, %v1584
      %v1713 = vmul.f32 %v1585, %v1585
      %v1714 = vmul.f32 %v1586, %v1586
      %v1715 = vmul.f32 %v1587, %v1587
      %v1716 = vmul.f32 %v1588, %v1588
      %v1717 = vmul.f32 %v1589, %v1589
      %v1718 = vmul.f32 %v1590, %v1590
      %v1719 = vmul.f32 %v1591, %v1591
      %v1720 = vmul.f32 %v1592, %v1592
      %v1721 = vmul.f32 %v1593, %v1593
      %v1722 = vmul.f32 %v1594, %v1594
      %v1723 = vmul.f32 %v1595, %v1595
      %v1724 = vsub.f32 %v1692, %v1708
      %v1725 = vsub.f32 %v1693, %v1709
      %v1726 = vsub.f32 %v1694, %v1710
      %v1727 = vsub.f32 %v1695, %v1711
      %v1728 = vsub.f32 %v1696, %v1712
      %v1729 = vsub.f32 %v1697, %v1713
      %v1730 = vsub.f32 %v1698, %v1714
      %v1731 = vsub.f32 %v1699, %v1715
      %v1732 = vsub.f32 %v1700, %v1716
      %v1733 = vsub.f32 %v1701, %v1717
      %v1734 = vsub.f32 %v1702, %v1718
      %v1735 = vsub.f32 %v1703, %v1719
      %v1736 = vsub.f32 %v1704, %v1720
      %v1737 = vsub.f32 %v1705, %v1721
      %v1738 = vsub.f32 %v1706, %v1722
      %v1739 = vsub.f32 %v1707, %v1723
      %v1740 = vadd.f32 %v1724, 0.001
      %v1741 = vadd.f32 %v1725, 0.001
      %v1742 = vadd.f32 %v1726, 0.001
      %v1743 = vadd.f32 %v1727, 0.001
      %v1744 = vadd.f32 %v1728, 0.001
      %v1745 = vadd.f32 %v1729, 0.001
      %v1746 = vadd.f32 %v1730, 0.001
      %v1747 = vadd.f32 %v1731, 0.001
      %v1748 = vadd.f32 %v1732, 0.001
      %v1749 = vadd.f32 %v1733, 0.001
      %v1750 = vadd.f32 %v1734, 0.001
      %v1751 = vadd.f32 %v1735, 0.001
      %v1752 = vadd.f32 %v1736, 0.001
      %v1753 = vadd.f32 %v1737, 0.001
      %v1754 = vadd.f32 %v1738, 0.001
      %v1755 = vadd.f32 %v1739, 0.001
      %v1756 = vrsqrt.pop %v1740
      %v1757 = vrsqrt.pop %v1741
      %v1758 = vrsqrt.pop %v1742
      %v1759 = vrsqrt.pop %v1743
      %v1760 = vrsqrt.pop %v1744
      %v1761 = vrsqrt.pop %v1745
      %v1762 = vrsqrt.pop %v1746
      %v1763 = vrsqrt.pop %v1747
      %v1764 = vrsqrt.pop %v1748
      %v1765 = vrsqrt.pop %v1749
      %v1766 = vrsqrt.pop %v1750
      %v1767 = vrsqrt.pop %v1751
      %v1768 = vrsqrt.pop %v1752
      %v1769 = vrsqrt.pop %v1753
      %v1770 = vrsqrt.pop %v1754
      %v1771 = vrsqrt.pop %v1755
      %v1772 = vld [vmem:[%s192] sm:$0xff]
      %v1773 = vld [vmem:[%s192 + $0x8] sm:$0xff]
      %v1774 = vld [vmem:[%s192 + $0x10] sm:$0xff]
      %v1775 = vld [vmem:[%s192 + $0x18] sm:$0xff]
      %v1776 = vld [vmem:[%s192 + $0x20] sm:$0xff]
      %v1777 = vld [vmem:[%s192 + $0x28] sm:$0xff]
      %v1778 = vld [vmem:[%s192 + $0x30] sm:$0xff]
      %v1779 = vld [vmem:[%s192 + $0x38] sm:$0xff]
      %v1780 = vld [vmem:[%s192 + $0x40] sm:$0xff]
      %v1781 = vld [vmem:[%s192 + $0x48] sm:$0xff]
      %v1782 = vld [vmem:[%s192 + $0x50] sm:$0xff]
      %v1783 = vld [vmem:[%s192 + $0x58] sm:$0xff]
      %v1784 = vld [vmem:[%s192 + $0x60] sm:$0xff]
      %v1785 = vld [vmem:[%s192 + $0x68] sm:$0xff]
      %v1786 = vld [vmem:[%s192 + $0x70] sm:$0xff]
      %v1787 = vld [vmem:[%s192 + $0x78] sm:$0xff]
      %v1788 = vmul.f32 %v1772, %v1756
      %v1789 = vmul.f32 %v1773, %v1757
      %v1790 = vmul.f32 %v1774, %v1758
      %v1791 = vmul.f32 %v1775, %v1759
      %v1792 = vmul.f32 %v1776, %v1760
      %v1793 = vmul.f32 %v1777, %v1761
      %v1794 = vmul.f32 %v1778, %v1762
      %v1795 = vmul.f32 %v1779, %v1763
      %v1796 = vmul.f32 %v1780, %v1764
      %v1797 = vmul.f32 %v1781, %v1765
      %v1798 = vmul.f32 %v1782, %v1766
      %v1799 = vmul.f32 %v1783, %v1767
      %v1800 = vmul.f32 %v1784, %v1768
      %v1801 = vmul.f32 %v1785, %v1769
      %v1802 = vmul.f32 %v1786, %v1770
      %v1803 = vmul.f32 %v1787, %v1771
      %v1804 = vmul.f32 %v1580, %v1788
      %v1805 = vmul.f32 %v1581, %v1789
      %v1806 = vmul.f32 %v1582, %v1790
      %v1807 = vmul.f32 %v1583, %v1791
      %v1808 = vmul.f32 %v1584, %v1792
      %v1809 = vmul.f32 %v1585, %v1793
      %v1810 = vmul.f32 %v1586, %v1794
      %v1811 = vmul.f32 %v1587, %v1795
      %v1812 = vmul.f32 %v1588, %v1796
      %v1813 = vmul.f32 %v1589, %v1797
      %v1814 = vmul.f32 %v1590, %v1798
      %v1815 = vmul.f32 %v1591, %v1799
      %v1816 = vmul.f32 %v1592, %v1800
      %v1817 = vmul.f32 %v1593, %v1801
      %v1818 = vmul.f32 %v1594, %v1802
      %v1819 = vmul.f32 %v1595, %v1803
      %1836 = vrot.lane.b32.xlu0 %v1804, 1
      %v1837 = vpop.permute.xlu0 %1836
      %1838 = vrot.lane.b32.xlu0 %v1805, 1
      %v1839 = vpop.permute.xlu0 %1838
      %1840 = vrot.lane.b32.xlu0 %v1806, 1
      %v1841 = vpop.permute.xlu0 %1840
      %1842 = vrot.lane.b32.xlu0 %v1807, 1
      %v1843 = vpop.permute.xlu0 %1842
      %1844 = vrot.lane.b32.xlu0 %v1808, 1
      %v1845 = vpop.permute.xlu0 %1844
      %1846 = vrot.lane.b32.xlu0 %v1809, 1
      %v1847 = vpop.permute.xlu0 %1846
      %1848 = vrot.lane.b32.xlu0 %v1810, 1
      %v1849 = vpop.permute.xlu0 %1848
      %1850 = vrot.lane.b32.xlu0 %v1811, 1
      %v1851 = vpop.permute.xlu0 %1850
      %1852 = vrot.lane.b32.xlu0 %v1812, 1
      %v1853 = vpop.permute.xlu0 %1852
      %1854 = vrot.lane.b32.xlu0 %v1813, 1
      %v1855 = vpop.permute.xlu0 %1854
      %1856 = vrot.lane.b32.xlu0 %v1814, 1
      %v1857 = vpop.permute.xlu0 %1856
      %1858 = vrot.lane.b32.xlu0 %v1815, 1
      %v1859 = vpop.permute.xlu0 %1858
      %1860 = vrot.lane.b32.xlu0 %v1816, 1
      %v1861 = vpop.permute.xlu0 %1860
      %1862 = vrot.lane.b32.xlu0 %v1817, 1
      %v1863 = vpop.permute.xlu0 %1862
      %1864 = vrot.lane.b32.xlu0 %v1818, 1
      %v1865 = vpop.permute.xlu0 %1864
      %1866 = vrot.lane.b32.xlu0 %v1819, 1
      %v1867 = vpop.permute.xlu0 %1866
      %v1884 = vsub.f32 %v1772, %v1837
      %v1885 = vsub.f32 %v1773, %v1839
      %v1886 = vsub.f32 %v1774, %v1841
      %v1887 = vsub.f32 %v1775, %v1843
      %v1888 = vsub.f32 %v1776, %v1845
      %v1889 = vsub.f32 %v1777, %v1847
      %v1890 = vsub.f32 %v1778, %v1849
      %v1891 = vsub.f32 %v1779, %v1851
      %v1892 = vsub.f32 %v1780, %v1853
      %v1893 = vsub.f32 %v1781, %v1855
      %v1894 = vsub.f32 %v1782, %v1857
      %v1895 = vsub.f32 %v1783, %v1859
      %v1896 = vsub.f32 %v1784, %v1861
      %v1897 = vsub.f32 %v1785, %v1863
      %v1898 = vsub.f32 %v1786, %v1865
      %v1899 = vsub.f32 %v1787, %v1867
      %1901 = vset.pattern.permute.xlu0 0
      %1902 = vperm.xlu0 %1901, %v1788
      %v1903 = vpop.permute.xlu0 %1902
      %1906 = vset.pattern.permute.xlu0 0
      %1907 = vperm.xlu0 %1906, %v1789
      %v1908 = vpop.permute.xlu0 %1907
      %1911 = vset.pattern.permute.xlu0 0
      %1912 = vperm.xlu0 %1911, %v1790
      %v1913 = vpop.permute.xlu0 %1912
      %1916 = vset.pattern.permute.xlu0 0
      %1917 = vperm.xlu0 %1916, %v1791
      %v1918 = vpop.permute.xlu0 %1917
      %1921 = vset.pattern.permute.xlu0 0
      %1922 = vperm.xlu0 %1921, %v1792
      %v1923 = vpop.permute.xlu0 %1922
      %1926 = vset.pattern.permute.xlu0 0
      %1927 = vperm.xlu0 %1926, %v1793
      %v1928 = vpop.permute.xlu0 %1927
      %1931 = vset.pattern.permute.xlu0 0
      %1932 = vperm.xlu0 %1931, %v1794
      %v1933 = vpop.permute.xlu0 %1932
      %1936 = vset.pattern.permute.xlu0 0
      %1937 = vperm.xlu0 %1936, %v1795
      %v1938 = vpop.permute.xlu0 %1937
      %1941 = vset.pattern.permute.xlu0 0
      %1942 = vperm.xlu0 %1941, %v1796
      %v1943 = vpop.permute.xlu0 %1942
      %1946 = vset.pattern.permute.xlu0 0
      %1947 = vperm.xlu0 %1946, %v1797
      %v1948 = vpop.permute.xlu0 %1947
      %1951 = vset.pattern.permute.xlu0 0
      %1952 = vperm.xlu0 %1951, %v1798
      %v1953 = vpop.permute.xlu0 %1952
      %1956 = vset.pattern.permute.xlu0 0
      %1957 = vperm.xlu0 %1956, %v1799
      %v1958 = vpop.permute.xlu0 %1957
      %1961 = vset.pattern.permute.xlu0 0
      %1962 = vperm.xlu0 %1961, %v1800
      %v1963 = vpop.permute.xlu0 %1962
      %1966 = vset.pattern.permute.xlu0 0
      %1967 = vperm.xlu0 %1966, %v1801
      %v1968 = vpop.permute.xlu0 %1967
      %1971 = vset.pattern.permute.xlu0 0
      %1972 = vperm.xlu0 %1971, %v1802
      %v1973 = vpop.permute.xlu0 %1972
      %1976 = vset.pattern.permute.xlu0 0
      %1977 = vperm.xlu0 %1976, %v1803
      %v1978 = vpop.permute.xlu0 %1977
      %v1980 = vmul.f32 %v1421, %v1903
      %v1981 = vmul.f32 %v1423, %v1903
      %v1982 = vmul.f32 %v1427, %v1908
      %v1983 = vmul.f32 %v1429, %v1908
      %v1984 = vmul.f32 %v1433, %v1913
      %v1985 = vmul.f32 %v1435, %v1913
      %v1986 = vmul.f32 %v1439, %v1918
      %v1987 = vmul.f32 %v1441, %v1918
      %v1988 = vmul.f32 %v1445, %v1923
      %v1989 = vmul.f32 %v1447, %v1923
      %v1990 = vmul.f32 %v1451, %v1928
      %v1991 = vmul.f32 %v1453, %v1928
      %v1992 = vmul.f32 %v1457, %v1933
      %v1993 = vmul.f32 %v1459, %v1933
      %v1994 = vmul.f32 %v1463, %v1938
      %v1995 = vmul.f32 %v1465, %v1938
      %v1996 = vmul.f32 %v1469, %v1943
      %v1997 = vmul.f32 %v1471, %v1943
      %v1998 = vmul.f32 %v1475, %v1948
      %v1999 = vmul.f32 %v1477, %v1948
      %v2000 = vmul.f32 %v1481, %v1953
      %v2001 = vmul.f32 %v1483, %v1953
      %v2002 = vmul.f32 %v1487, %v1958
      %v2003 = vmul.f32 %v1489, %v1958
      %v2004 = vmul.f32 %v1493, %v1963
      %v2005 = vmul.f32 %v1495, %v1963
      %v2006 = vmul.f32 %v1499, %v1968
      %v2007 = vmul.f32 %v1501, %v1968
      %v2008 = vmul.f32 %v1505, %v1973
      %v2009 = vmul.f32 %v1507, %v1973
      %v2010 = vmul.f32 %v1511, %v1978
      %v2011 = vmul.f32 %v1513, %v1978
      %2013 = vset.pattern.permute.xlu0 1
      %2014 = vperm.xlu0 %2013, %v1884
      %v2015 = vpop.permute.xlu0 %2014
      %2018 = vset.pattern.permute.xlu0 1
      %2019 = vperm.xlu0 %2018, %v1885
      %v2020 = vpop.permute.xlu0 %2019
      %2023 = vset.pattern.permute.xlu0 1
      %2024 = vperm.xlu0 %2023, %v1886
      %v2025 = vpop.permute.xlu0 %2024
      %2028 = vset.pattern.permute.xlu0 1
      %2029 = vperm.xlu0 %2028, %v1887
      %v2030 = vpop.permute.xlu0 %2029
      %2033 = vset.pattern.permute.xlu0 1
      %2034 = vperm.xlu0 %2033, %v1888
      %v2035 = vpop.permute.xlu0 %2034
      %2038 = vset.pattern.permute.xlu0 1
      %2039 = vperm.xlu0 %2038, %v1889
      %v2040 = vpop.permute.xlu0 %2039
      %2043 = vset.pattern.permute.xlu0 1
      %2044 = vperm.xlu0 %2043, %v1890
      %v2045 = vpop.permute.xlu0 %2044
      %2048 = vset.pattern.permute.xlu0 1
      %2049 = vperm.xlu0 %2048, %v1891
      %v2050 = vpop.permute.xlu0 %2049
      %2053 = vset.pattern.permute.xlu0 1
      %2054 = vperm.xlu0 %2053, %v1892
      %v2055 = vpop.permute.xlu0 %2054
      %2058 = vset.pattern.permute.xlu0 1
      %2059 = vperm.xlu0 %2058, %v1893
      %v2060 = vpop.permute.xlu0 %2059
      %2063 = vset.pattern.permute.xlu0 1
      %2064 = vperm.xlu0 %2063, %v1894
      %v2065 = vpop.permute.xlu0 %2064
      %2068 = vset.pattern.permute.xlu0 1
      %2069 = vperm.xlu0 %2068, %v1895
      %v2070 = vpop.permute.xlu0 %2069
      %2073 = vset.pattern.permute.xlu0 1
      %2074 = vperm.xlu0 %2073, %v1896
      %v2075 = vpop.permute.xlu0 %2074
      %2078 = vset.pattern.permute.xlu0 1
      %2079 = vperm.xlu0 %2078, %v1897
      %v2080 = vpop.permute.xlu0 %2079
      %2083 = vset.pattern.permute.xlu0 1
      %2084 = vperm.xlu0 %2083, %v1898
      %v2085 = vpop.permute.xlu0 %2084
      %2088 = vset.pattern.permute.xlu0 1
      %2089 = vperm.xlu0 %2088, %v1899
      %v2090 = vpop.permute.xlu0 %2089
      %v2092 = vadd.f32 %v1980, %v2015
      %v2093 = vadd.f32 %v1981, %v2015
      %v2094 = vadd.f32 %v1982, %v2020
      %v2095 = vadd.f32 %v1983, %v2020
      %v2096 = vadd.f32 %v1984, %v2025
      %v2097 = vadd.f32 %v1985, %v2025
      %v2098 = vadd.f32 %v1986, %v2030
      %v2099 = vadd.f32 %v1987, %v2030
      %v2100 = vadd.f32 %v1988, %v2035
      %v2101 = vadd.f32 %v1989, %v2035
      %v2102 = vadd.f32 %v1990, %v2040
      %v2103 = vadd.f32 %v1991, %v2040
      %v2104 = vadd.f32 %v1992, %v2045
      %v2105 = vadd.f32 %v1993, %v2045
      %v2106 = vadd.f32 %v1994, %v2050
      %v2107 = vadd.f32 %v1995, %v2050
      %v2108 = vadd.f32 %v1996, %v2055
      %v2109 = vadd.f32 %v1997, %v2055
      %v2110 = vadd.f32 %v1998, %v2060
      %v2111 = vadd.f32 %v1999, %v2060
      %v2112 = vadd.f32 %v2000, %v2065
      %v2113 = vadd.f32 %v2001, %v2065
      %v2114 = vadd.f32 %v2002, %v2070
      %v2115 = vadd.f32 %v2003, %v2070
      %v2116 = vadd.f32 %v2004, %v2075
      %v2117 = vadd.f32 %v2005, %v2075
      %v2118 = vadd.f32 %v2006, %v2080
      %v2119 = vadd.f32 %v2007, %v2080
      %v2120 = vadd.f32 %v2008, %v2085
      %v2121 = vadd.f32 %v2009, %v2085
      %v2122 = vadd.f32 %v2010, %v2090
      %v2123 = vadd.f32 %v2011, %v2090
      %2124 = vst [vmem:[%s199] sm:$0xff] %v2092
      %2125 = vst.msk [vmem:[%s199 + $0x8] sm:$0xff] %vm1515, %v2093
      %2126 = vst [vmem:[%s199 + $0x10] sm:$0xff] %v2094
      %2127 = vst.msk [vmem:[%s199 + $0x18] sm:$0xff] %vm1515, %v2095
      %2128 = vst [vmem:[%s199 + $0x20] sm:$0xff] %v2096
      %2129 = vst.msk [vmem:[%s199 + $0x28] sm:$0xff] %vm1515, %v2097
      %2130 = vst [vmem:[%s199 + $0x30] sm:$0xff] %v2098
      %2131 = vst.msk [vmem:[%s199 + $0x38] sm:$0xff] %vm1515, %v2099
      %2132 = vst [vmem:[%s199 + $0x40] sm:$0xff] %v2100
      %2133 = vst.msk [vmem:[%s199 + $0x48] sm:$0xff] %vm1515, %v2101
      %2134 = vst [vmem:[%s199 + $0x50] sm:$0xff] %v2102
      %2135 = vst.msk [vmem:[%s199 + $0x58] sm:$0xff] %vm1515, %v2103
      %2136 = vst [vmem:[%s199 + $0x60] sm:$0xff] %v2104
      %2137 = vst.msk [vmem:[%s199 + $0x68] sm:$0xff] %vm1515, %v2105
      %2138 = vst [vmem:[%s199 + $0x70] sm:$0xff] %v2106
      %2139 = vst.msk [vmem:[%s199 + $0x78] sm:$0xff] %vm1515, %v2107
      %2140 = vst [vmem:[%s199 + $0x80] sm:$0xff] %v2108
      %2141 = vst.msk [vmem:[%s199 + $0x88] sm:$0xff] %vm1515, %v2109
      %2142 = vst [vmem:[%s199 + $0x90] sm:$0xff] %v2110
      %2143 = vst.msk [vmem:[%s199 + $0x98] sm:$0xff] %vm1515, %v2111
      %2144 = vst [vmem:[%s199 + $0xa0] sm:$0xff] %v2112
      %2145 = vst.msk [vmem:[%s199 + $0xa8] sm:$0xff] %vm1515, %v2113
      %2146 = vst [vmem:[%s199 + $0xb0] sm:$0xff] %v2114
      %2147 = vst.msk [vmem:[%s199 + $0xb8] sm:$0xff] %vm1515, %v2115
      %2148 = vst [vmem:[%s199 + $0xc0] sm:$0xff] %v2116
      %2149 = vst.msk [vmem:[%s199 + $0xc8] sm:$0xff] %vm1515, %v2117
      %2150 = vst [vmem:[%s199 + $0xd0] sm:$0xff] %v2118
      %2151 = vst.msk [vmem:[%s199 + $0xd8] sm:$0xff] %vm1515, %v2119
      %2152 = vst [vmem:[%s199 + $0xe0] sm:$0xff] %v2120
      %2153 = vst.msk [vmem:[%s199 + $0xe8] sm:$0xff] %vm1515, %v2121
      %2154 = vst [vmem:[%s199 + $0xf0] sm:$0xff] %v2122
      %2155 = vst.msk [vmem:[%s199 + $0xf8] sm:$0xff] %vm1515, %v2123
      %s2156 = smul.u32 16, %s14
      %p2157 = scmp.lt.s32.totalorder %s2156, 31
      %s2158 = scalar_select %p2157, %s2156, 31
      %s2159 = smul.addr %s2158, 2
      %s2160 = smul.addr %s2159, 8
      %s2161 = scalar_lea.vmem %s3, %s2160
      // Predicated region
      $region33: #{conv1x1_bn.1} parent=31 // pred_check
        %p2162 = pneg %p105
      $region34: #{conv1x1_bn.1} parent=31 // pred_check_branch
        %2164 = sbr.rel (%p2162) target = $region36
      $region35: #{conv1x1_bn.1} parent=31 // pred_region
        %s2165 = smul.u32 16, %s14
      $region36: #{conv1x1_bn.1} parent=31 // pred_fallthru
        _
    $region32: #{conv1x1_bn.1} parent=5 // pred_fallthru
      _
    %p2166 = scmp.le.s32.totalorder 2, %s9
    // Predicated region
    $region37: #{conv1x1_bn.1} parent=5 // pred_check
      %p2167 = pneg %p2166
    $region38: #{conv1x1_bn.1} parent=5 // pred_check_branch
      %2169 = sbr.rel (%p2167) target = $region40
    $region39: #{conv1x1_bn.1} parent=5 // pred_region
      %s2170 = ssub.s32 %s9, 2
      // Predicated region
      $region41: #{conv1x1_bn.1} parent=39 // pred_check
        %p2171 = pneg %p111
      $region42: #{conv1x1_bn.1} parent=39 // pred_check_branch
        %2173 = sbr.rel (%p2171) target = $region44
      $region43: #{conv1x1_bn.1} parent=39 // pred_region
        %s2174 = smul.u32 16, %s15
        %p2175 = scmp.lt.s32.totalorder %s2174, 31
        %s2176 = scalar_select %p2175, %s2174, 31
        %s2177 = smul.addr %s2176, 2
        %s2178 = smul.addr %s2177, 8
        %s2179 = scalar_lea.vmem %s3, %s2178
      $region44: #{conv1x1_bn.1} parent=39 // pred_fallthru
        _
    $region40: #{conv1x1_bn.1} parent=5 // pred_fallthru
      _
  $region6: #{conv1x1_bn.1} parent=0 // loop_footer
    %s13 = sadd.s32 1, %s9
  $region7: #{conv1x1_bn.1} parent=0 // loop_footer_branch
    %8 = sbr.rel target = $region3
  $region8: #{conv1x1_bn.1} parent=0 // loop_exit
    _

</llo_original>
